<compile_context>
chip_gen: v6e
topology: v6e:2x2x1
jax: 0.10.0
libtpu: 0.0.40
codegen_flags: <defaults>
</compile_context>

<pallas_src>
import jax
import jax.numpy as jnp
from jax import lax
from jax.experimental import pallas as pl
from jax.experimental.pallas import tpu as pltpu


def _round_up(x, m):
    return ((x + m - 1) // m) * m


_T = 8  # time sub-block size (one full sublane tile of steps)


def make_ssm_kernel(l_chunk, seg, n_pad):
    """l_chunk: steps per grid chunk (multiple of _T); seg: 128-aligned slab
    width of the delta-raw / B / C segments; n_pad: padded state dim."""
    T = _T
    n_sub = l_chunk // T

    def kernel(x_ref, wdbc_ref, wdt_ref, bdt_ref, at_ref, d_ref, o_ref,
               h_ref, delta_ref, dx_ref, bm_ref, cm_ref):
        # New sequence (first L-chunk of this batch element): reset the state.
        @pl.when(pl.program_id(1) == 0)
        def _():
            h_ref[...] = jnp.zeros_like(h_ref)

        # ---- chunk-batched projections on the MXU (weights stay resident) ----
        x = x_ref[...]                                            # (Lc, EDp)
        dbc = jnp.dot(x, wdbc_ref[...],
                      preferred_element_type=jnp.float32)         # (Lc, 3*seg)
        delta = jax.nn.softplus(
            jnp.dot(dbc[:, :seg], wdt_ref[...],
                    preferred_element_type=jnp.float32) + bdt_ref[...])
        delta_ref[...] = delta                                    # (Lc, EDp)
        dx_ref[...] = delta * x                                   # (Lc, EDp)
        bm_ref[...] = dbc[:, seg:2 * seg]                         # (Lc, seg)
        cm_ref[...] = dbc[:, 2 * seg:3 * seg]                     # (Lc, seg)

        a_t = at_ref[...]                                         # (Np, EDp)
        d_vec = d_ref[...]                                        # (1, EDp)
        # Lane->sublane scatter identity (moves B/C row values onto the state
        # sublane axis); used off the loop-carried chain.
        eye = (lax.broadcasted_iota(jnp.int32, (n_pad, seg), 0) ==
               lax.broadcasted_iota(jnp.int32, (n_pad, seg), 1)
               ).astype(jnp.float32)

        # ---- selective scan: T-step sub-blocks, fully-unrolled recurrence ----
        def sub_block(s, h):
            t0 = pl.multiple_of(s * T, T)
            d_sub = delta_ref[pl.ds(t0, T), :]                    # (T, EDp)
            dx_sub = dx_ref[pl.ds(t0, T), :]                      # (T, EDp)
            x_sub = x_ref[pl.ds(t0, T), :]                        # (T, EDp)
            b_sub = bm_ref[pl.ds(t0, T), :]                       # (T, seg)
            c_sub = cm_ref[pl.ds(t0, T), :]                       # (T, seg)

            ys = []
            for t in range(T):                                    # fully unrolled
                # Everything below except the h FMA is independent of h, so
                # EUP/XLU/VPU work pipelines across the unrolled steps.
                b_col = jnp.sum(b_sub[t:t + 1, :] * eye, axis=1,
                                keepdims=True)                    # (Np, 1)
                c_col = jnp.sum(c_sub[t:t + 1, :] * eye, axis=1,
                                keepdims=True)                    # (Np, 1)
                dA = jnp.exp(d_sub[t:t + 1, :] * a_t)             # (Np, EDp)
                bx = b_col * dx_sub[t:t + 1, :]                   # (Np, EDp)
                h = dA * h + bx                                   # serial FMA only
                ys.append(jnp.sum(c_col * h, axis=0,
                                  keepdims=True))                 # (1, EDp)

            y_blk = jnp.concatenate(ys, axis=0)                   # (T, EDp)
            o_ref[pl.ds(t0, T), :] = y_blk + d_vec * x_sub        # unmasked slab
            return h

        h_final = lax.fori_loop(0, n_sub, sub_block, h_ref[...])
        h_ref[...] = h_final

    return kernel


def ssm_forward(x, w_deltaBC_t, w_dt_t, b_dt, A, D, dt_rank, d_state,
                *, l_chunk=128):
    """x: (B, L, ED); weights pre-transposed as (in, out); A: (ED, N)."""
    Bsz, L, ED = x.shape
    N, R = d_state, dt_rank
    f32 = jnp.float32
    T = _T

    # Lane-dense / sublane-dense padding.
    EDp = _round_up(max(ED, 128), 128)
    Np = _round_up(max(N, 8), 8)
    seg = max(_round_up(max(R, 1), 128), _round_up(N, 128))
    Lc = max(T, _round_up(min(l_chunk, L), T))
    Lp = _round_up(L, Lc)
    n_chunks = Lp // Lc

    x = x.astype(f32)
    if EDp == ED and Lp == L:
        x_p = x                                   # no pad copy needed
    else:
        x_p = jnp.zeros((Bsz, Lp, EDp), f32).at[:, :L, :ED].set(x)

    # Lane-aligned projection weight: delta-raw cols at [0, seg), B at
    # [seg, 2*seg), C at [2*seg, 3*seg) so all output slabs are lane-dense.
    wdbc_p = jnp.zeros((EDp, 3 * seg), f32)
    wdbc_p = wdbc_p.at[:ED, :R].set(w_deltaBC_t[:, :R].astype(f32))
    wdbc_p = wdbc_p.at[:ED, seg:seg + N].set(
        w_deltaBC_t[:, R:R + N].astype(f32))
    wdbc_p = wdbc_p.at[:ED, 2 * seg:2 * seg + N].set(
        w_deltaBC_t[:, R + N:R + 2 * N].astype(f32))

    wdt_p = jnp.zeros((seg, EDp), f32).at[:R, :ED].set(w_dt_t.astype(f32))
    bdt_p = jnp.zeros((1, EDp), f32).at[:, :ED].set(
        jnp.reshape(b_dt, (1, ED)).astype(f32))
    a_t_p = jnp.zeros((Np, EDp), f32).at[:N, :ED].set(A.T.astype(f32))
    d_p = jnp.zeros((1, EDp), f32).at[:, :ED].set(
        jnp.reshape(D, (1, ED)).astype(f32))

    kernel = make_ssm_kernel(Lc, seg, Np)

    # VMEM budget: double-buffered x/out blocks + resident (double-buffered)
    # weights + scratch, with 2x headroom; clamp to [32 MiB, 64 MiB] so the
    # limit is valid across v5e/v6e/v7x.
    blk = 4 * Lc * EDp
    wgt = 4 * (EDp * 3 * seg + seg * EDp + EDp + Np * EDp + EDp)
    scr = 4 * (Np * EDp + 2 * Lc * EDp + 2 * Lc * seg)
    est = 2 * (2 * 2 * blk + 2 * wgt + scr)
    vmem_bytes = int(min(64 * 2**20, max(32 * 2**20, est)))

    out = pl.pallas_call(
        kernel,
        out_shape=jax.ShapeDtypeStruct((Bsz, Lp, EDp), f32),
        grid=(Bsz, n_chunks),
        in_specs=[
            pl.BlockSpec((pl.Squeezed(), Lc, EDp), lambda b, c: (b, c, 0)),  # x
            pl.BlockSpec((EDp, 3 * seg), lambda b, c: (0, 0)),   # W_deltaBC^T
            pl.BlockSpec((seg, EDp), lambda b, c: (0, 0)),       # W_dt^T
            pl.BlockSpec((1, EDp), lambda b, c: (0, 0)),         # b_dt
            pl.BlockSpec((Np, EDp), lambda b, c: (0, 0)),        # A^T
            pl.BlockSpec((1, EDp), lambda b, c: (0, 0)),         # D
        ],
        out_specs=pl.BlockSpec((pl.Squeezed(), Lc, EDp), lambda b, c: (b, c, 0)),
        scratch_shapes=[
            pltpu.VMEM((Np, EDp), f32),    # h   (persists across L-chunks)
            pltpu.VMEM((Lc, EDp), f32),    # delta for the current chunk
            pltpu.VMEM((Lc, EDp), f32),    # delta * x for the current chunk
            pltpu.VMEM((Lc, seg), f32),    # B slab (lane-dense)
            pltpu.VMEM((Lc, seg), f32),    # C slab (lane-dense)
        ],
        compiler_params=pltpu.CompilerParams(
            dimension_semantics=("parallel", "arbitrary"),
            vmem_limit_bytes=vmem_bytes),
    )(x_p, wdbc_p, wdt_p, bdt_p, a_t_p, d_p)

    if EDp == ED and Lp == L:
        return out
    return out[:, :L, :ED]


def ssm_ref(x, w_deltaBC_t, w_dt_t, b_dt, A, D, dt_rank, d_state):
    """Pure-JAX reference mirroring the PyTorch selective_scan semantics."""
    deltaBC = x @ w_deltaBC_t
    delta, Bm, Cm = jnp.split(deltaBC, [dt_rank, dt_rank + d_state], axis=-1)
    delta = jax.nn.softplus(delta @ w_dt_t + b_dt)
    deltaA = jnp.exp(delta[..., None] * A)                       # (B, L, ED, N)
    BX = delta[..., None] * Bm[:, :, None, :] * x[..., None]     # (B, L, ED, N)

    def step(h, inp):
        dA, bx = inp
        h = dA * h + bx
        return h, h

    Bsz, L, ED = x.shape
    h0 = jnp.zeros((Bsz, ED, d_state), jnp.float32)
    _, hs = lax.scan(step, h0,
                     (jnp.swapaxes(deltaA, 0, 1), jnp.swapaxes(BX, 0, 1)))
    hs = jnp.swapaxes(hs, 0, 1)                                  # (B, L, ED, N)
    y = jnp.sum(hs * Cm[:, :, None, :], axis=-1)
    return y + D * x


if __name__ == "__main__":
    # Small shapes consistent with the module's SSM forward; L spans two
    # chunks of two sub-blocks each, so the state-carry path, the sub-block
    # loop and the unrolled recurrence are all exercised.
    Bsz, L = 2, 32
    in_features = 32          # == dim_inner (ED), as implied by selective_scan
    dim_inner = 32
    dt_rank = 4
    d_state = 8

    key = jax.random.PRNGKey(0)
    kx, kw1, kw2, kb = jax.random.split(key, 4)

    x = jax.random.normal(kx, (Bsz, L, in_features), dtype=jnp.float32)

    # nn.Linear(in_features, dt_rank + 2*d_state, bias=False): weight (out, in)
    # -> stored transposed (in, out).
    w_deltaBC_t = 0.1 * jax.random.normal(
        kw1, (in_features, dt_rank + 2 * d_state), dtype=jnp.float32)
    # nn.Linear(dt_rank, dim_inner, bias=True): weight (dim_inner, dt_rank)
    # -> stored transposed (dt_rank, dim_inner).
    w_dt_t = 0.1 * jax.random.normal(kw2, (dt_rank, dim_inner), dtype=jnp.float32)
    b_dt = 0.1 * jax.random.normal(kb, (1, dim_inner), dtype=jnp.float32)

    # A_log = log(arange(1..d_state)) repeated over dim_inner; A = -exp(A_log).
    A_log = jnp.log(jnp.tile(jnp.arange(1, d_state + 1, dtype=jnp.float32),
                             (dim_inner, 1)))
    A = -jnp.exp(A_log)                                          # (ED, N)
    D = jnp.ones((1, dim_inner), dtype=jnp.float32)

    # TODO(synk): full Vim wrapper (patch embed, LayerNorm, 1x1 Conv1d, SiLU
    # gate, residual, classifier head) is plain dense/elementwise work left to
    # XLA; only the selective-scan core is implemented as a Pallas kernel.
    y = ssm_forward(x, w_deltaBC_t, w_dt_t, b_dt, A, D, dt_rank, d_state,
                    l_chunk=16)
    y = jax.block_until_ready(y)

    y_ref = ssm_ref(x, w_deltaBC_t, w_dt_t, b_dt, A, D, dt_rank, d_state)
    assert jnp.allclose(y, y_ref, atol=2e-4, rtol=2e-4), "mismatch vs JAX reference"

    print("KERNEL_OK")
</pallas_src>

<mosaic_0001>
module attributes {stable_mosaic.version = 11 : i64} {
  func.func @kernel(%arg0: i32, %arg1: i32, %arg2: memref<1x16x128xf32, #tpu.memory_space<vmem>>, %arg3: memref<128x384xf32, #tpu.memory_space<vmem>>, %arg4: memref<128x128xf32, #tpu.memory_space<vmem>>, %arg5: memref<1x128xf32, #tpu.memory_space<vmem>>, %arg6: memref<8x128xf32, #tpu.memory_space<vmem>>, %arg7: memref<1x128xf32, #tpu.memory_space<vmem>>, %arg8: memref<1x16x128xf32, #tpu.memory_space<vmem>>, %arg9: memref<8x128xf32, #tpu.memory_space<vmem>>, %arg10: memref<16x128xf32, #tpu.memory_space<vmem>>, %arg11: memref<16x128xf32, #tpu.memory_space<vmem>>, %arg12: memref<16x128xf32, #tpu.memory_space<vmem>>, %arg13: memref<16x128xf32, #tpu.memory_space<vmem>>) attributes {dimension_semantics = [#tpu.dimension_semantics<parallel>, #tpu.dimension_semantics<arbitrary>], iteration_bounds = array<i64: 2, 2>, scalar_prefetch = 0 : i64, scratch_operands = 5 : i64, tpu.core_type = #tpu.core_type<tc>, window_params = [{transform_indices = @transform_0, window_bounds = array<i64: 1, 16, 128>}, {pipeline_mode = #tpu.pipeline_mode<synchronous>, transform_indices = @transform_1, window_bounds = array<i64: 128, 384>}, {pipeline_mode = #tpu.pipeline_mode<synchronous>, transform_indices = @transform_2, window_bounds = array<i64: 128, 128>}, {pipeline_mode = #tpu.pipeline_mode<synchronous>, transform_indices = @transform_3, window_bounds = array<i64: 1, 128>}, {pipeline_mode = #tpu.pipeline_mode<synchronous>, transform_indices = @transform_4, window_bounds = array<i64: 8, 128>}, {pipeline_mode = #tpu.pipeline_mode<synchronous>, transform_indices = @transform_5, window_bounds = array<i64: 1, 128>}, {transform_indices = @transform_6, window_bounds = array<i64: 1, 16, 128>}]} {
    %c0_i32 = arith.constant 0 : i32
    %0 = arith.cmpi eq, %arg1, %c0_i32 : i32
    %1 = arith.extui %0 : i1 to i32
    %c0_i32_0 = arith.constant 0 : i32
    %2 = arith.cmpi ne, %1, %c0_i32_0 : i32
    scf.if %2 {
      %cst_30 = arith.constant 0.000000e+00 : f32
      %45 = vector.broadcast %cst_30 : f32 to vector<8x128xf32>
      %c0_31 = arith.constant 0 : index
      %c0_32 = arith.constant 0 : index
      %46 = vector.load %arg9[%c0_31, %c0_32] : memref<8x128xf32, #tpu.memory_space<vmem>>, vector<8x128xf32>
      tpu.vector_store %arg9[%c0_31, %c0_32], %45 {strides = array<i32>} : memref<8x128xf32, #tpu.memory_space<vmem>>, vector<8x128xf32>,
    } else {
    }
    %c0 = arith.constant 0 : index
    %c0_1 = arith.constant 0 : index
    %c0_2 = arith.constant 0 : index
    %3 = vector.load %arg2[%c0, %c0_1, %c0_2] : memref<1x16x128xf32, #tpu.memory_space<vmem>>, vector<1x16x128xf32>
    %4 = vector.shape_cast %3 : vector<1x16x128xf32> to vector<16x128xf32>
    %c0_3 = arith.constant 0 : index
    %c0_4 = arith.constant 0 : index
    %5 = vector.load %arg3[%c0_3, %c0_4] : memref<128x384xf32, #tpu.memory_space<vmem>>, vector<128x384xf32>
    %cst = arith.constant dense<0.000000e+00> : vector<16x384xf32>
    %6 = tpu.matmul %4, %5, %cst {dimension_numbers = #tpu.dot_dimension_numbers<[1], [0], [0], [1], [0, 0, 1, 1], [], []>} : vector<16x128xf32>, vector<128x384xf32>, vector<16x384xf32> -> vector<16x384xf32>
    %7 = vector.extract_strided_slice %6 {offsets = [0, 0], sizes = [16, 128], strides = [1, 1]} : vector<16x384xf32> to vector<16x128xf32>
    %c0_5 = arith.constant 0 : index
    %c0_6 = arith.constant 0 : index
    %8 = vector.load %arg4[%c0_5, %c0_6] : memref<128x128xf32, #tpu.memory_space<vmem>>, vector<128x128xf32>
    %cst_7 = arith.constant dense<0.000000e+00> : vector<16x128xf32>
    %9 = tpu.matmul %7, %8, %cst_7 {dimension_numbers = #tpu.dot_dimension_numbers<[1], [0], [0], [1], [0, 0, 1, 1], [], []>} : vector<16x128xf32>, vector<128x128xf32>, vector<16x128xf32> -> vector<16x128xf32>
    %c0_8 = arith.constant 0 : index
    %c0_9 = arith.constant 0 : index
    %10 = vector.load %arg5[%c0_8, %c0_9] : memref<1x128xf32, #tpu.memory_space<vmem>>, vector<1x128xf32>
    %11 = vector.broadcast %10 : vector<1x128xf32> to vector<16x128xf32>
    %12 = arith.addf %9, %11 : vector<16x128xf32>
    %cst_10 = arith.constant 0.000000e+00 : f32
    %13 = vector.broadcast %cst_10 : f32 to vector<16x128xf32>
    %14 = arith.maximumf %12, %13 : vector<16x128xf32>
    %15 = vector.broadcast %cst_10 : f32 to vector<16x128xf32>
    %16 = arith.subf %12, %15 : vector<16x128xf32>
    %17 = arith.cmpf one, %16, %16 : vector<16x128xf32>
    %18 = vector.broadcast %cst_10 : f32 to vector<16x128xf32>
    %19 = arith.addf %12, %18 : vector<16x128xf32>
    %20 = math.absf %16 : vector<16x128xf32>
    %cst_11 = arith.constant 0.000000e+00 : f32
    %21 = vector.broadcast %cst_11 : f32 to vector<16x128xf32>
    %22 = arith.subf %21, %20 : vector<16x128xf32>
    %23 = math.exp %22 : vector<16x128xf32>
    %24 = math.log1p %23 : vector<16x128xf32>
    %25 = arith.addf %14, %24 : vector<16x128xf32>
    %26 = arith.select %17, %19, %25 : vector<16x128xi1>, vector<16x128xf32>
    %c0_12 = arith.constant 0 : index
    %c0_13 = arith.constant 0 : index
    %27 = vector.load %arg10[%c0_12, %c0_13] : memref<16x128xf32, #tpu.memory_space<vmem>>, vector<16x128xf32>
    tpu.vector_store %arg10[%c0_12, %c0_13], %26 {strides = array<i32>} : memref<16x128xf32, #tpu.memory_space<vmem>>, vector<16x128xf32>,
    %28 = arith.mulf %26, %4 : vector<16x128xf32>
    %c0_14 = arith.constant 0 : index
    %c0_15 = arith.constant 0 : index
    %29 = vector.load %arg11[%c0_14, %c0_15] : memref<16x128xf32, #tpu.memory_space<vmem>>, vector<16x128xf32>
    tpu.vector_store %arg11[%c0_14, %c0_15], %28 {strides = array<i32>} : memref<16x128xf32, #tpu.memory_space<vmem>>, vector<16x128xf32>,
    %30 = vector.extract_strided_slice %6 {offsets = [0, 128], sizes = [16, 128], strides = [1, 1]} : vector<16x384xf32> to vector<16x128xf32>
    %c0_16 = arith.constant 0 : index
    %c0_17 = arith.constant 0 : index
    %31 = vector.load %arg12[%c0_16, %c0_17] : memref<16x128xf32, #tpu.memory_space<vmem>>, vector<16x128xf32>
    tpu.vector_store %arg12[%c0_16, %c0_17], %30 {strides = array<i32>} : memref<16x128xf32, #tpu.memory_space<vmem>>, vector<16x128xf32>,
    %32 = vector.extract_strided_slice %6 {offsets = [0, 256], sizes = [16, 128], strides = [1, 1]} : vector<16x384xf32> to vector<16x128xf32>
    %c0_18 = arith.constant 0 : index
    %c0_19 = arith.constant 0 : index
    %33 = vector.load %arg13[%c0_18, %c0_19] : memref<16x128xf32, #tpu.memory_space<vmem>>, vector<16x128xf32>
    tpu.vector_store %arg13[%c0_18, %c0_19], %32 {strides = array<i32>} : memref<16x128xf32, #tpu.memory_space<vmem>>, vector<16x128xf32>,
    %c0_20 = arith.constant 0 : index
    %c0_21 = arith.constant 0 : index
    %34 = vector.load %arg6[%c0_20, %c0_21] : memref<8x128xf32, #tpu.memory_space<vmem>>, vector<8x128xf32>
    %c0_22 = arith.constant 0 : index
    %c0_23 = arith.constant 0 : index
    %35 = vector.load %arg7[%c0_22, %c0_23] : memref<1x128xf32, #tpu.memory_space<vmem>>, vector<1x128xf32>
    %36 = tpu.iota {dimensions = array<i32: 0>} : vector<8x128xi32>
    %37 = tpu.iota {dimensions = array<i32: 1>} : vector<8x128xi32>
    %38 = arith.cmpi eq, %36, %37 : vector<8x128xi32>
    %39 = arith.extui %38 : vector<8x128xi1> to vector<8x128xi32>
    %40 = arith.sitofp %39 : vector<8x128xi32> to vector<8x128xf32>
    %c0_24 = arith.constant 0 : index
    %c0_25 = arith.constant 0 : index
    %41 = vector.load %arg9[%c0_24, %c0_25] : memref<8x128xf32, #tpu.memory_space<vmem>>, vector<8x128xf32>
    %c0_i32_26 = arith.constant 0 : i32
    %c2_i32 = arith.constant 2 : i32
    %42 = arith.addi %c0_i32_26, %c2_i32 : i32
    %c1_i32 = arith.constant 1 : i32
    %43 = scf.for %arg14 = %c0_i32_26 to %42 step %c1_i32 iter_args(%arg15 = %41) -> (vector<8x128xf32>)  : i32 {
      %c8_i32 = arith.constant 8 : i32
      %45 = arith.muli %arg14, %c8_i32 : i32
      %46 = tpu.assume_multiple %45, 8 : i32
      %47 = arith.index_cast %46 : i32 to index
      %c0_30 = arith.constant 0 : index
      %48 = vector.load %arg10[%47, %c0_30] : memref<16x128xf32, #tpu.memory_space<vmem>>, vector<8x128xf32>
      %49 = arith.index_cast %46 : i32 to index
      %c0_31 = arith.constant 0 : index
      %50 = vector.load %arg11[%49, %c0_31] : memref<16x128xf32, #tpu.memory_space<vmem>>, vector<8x128xf32>
      %c0_32 = arith.constant 0 : index
      %51 = arith.index_cast %46 : i32 to index
      %c0_33 = arith.constant 0 : index
      %52 = vector.load %arg2[%c0_32, %51, %c0_33] : memref<1x16x128xf32, #tpu.memory_space<vmem>>, vector<1x8x128xf32>
      %53 = vector.shape_cast %52 : vector<1x8x128xf32> to vector<8x128xf32>
      %54 = arith.index_cast %46 : i32 to index
      %c0_34 = arith.constant 0 : index
      %55 = vector.load %arg12[%54, %c0_34] : memref<16x128xf32, #tpu.memory_space<vmem>>, vector<8x128xf32>
      %56 = arith.index_cast %46 : i32 to index
      %c0_35 = arith.constant 0 : index
      %57 = vector.load %arg13[%56, %c0_35] : memref<16x128xf32, #tpu.memory_space<vmem>>, vector<8x128xf32>
      %58 = vector.extract_strided_slice %55 {offsets = [0, 0], sizes = [1, 128], strides = [1, 1]} : vector<8x128xf32> to vector<1x128xf32>
      %59 = vector.broadcast %58 : vector<1x128xf32> to vector<8x128xf32>
      %60 = arith.mulf %59, %40 : vector<8x128xf32>
      %cst_36 = arith.constant dense<0.000000e+00> : vector<8xf32>
      %61 = vector.multi_reduction <add>, %60, %cst_36 [1] : vector<8x128xf32> to vector<8xf32>
      %62 = vector.shape_cast %61 : vector<8xf32> to vector<8x1xf32>
      %63 = vector.extract_strided_slice %57 {offsets = [0, 0], sizes = [1, 128], strides = [1, 1]} : vector<8x128xf32> to vector<1x128xf32>
      %64 = vector.broadcast %63 : vector<1x128xf32> to vector<8x128xf32>
      %65 = arith.mulf %64, %40 : vector<8x128xf32>
      %cst_37 = arith.constant dense<0.000000e+00> : vector<8xf32>
      %66 = vector.multi_reduction <add>, %65, %cst_37 [1] : vector<8x128xf32> to vector<8xf32>
      %67 = vector.shape_cast %66 : vector<8xf32> to vector<8x1xf32>
      %68 = vector.extract_strided_slice %48 {offsets = [0, 0], sizes = [1, 128], strides = [1, 1]} : vector<8x128xf32> to vector<1x128xf32>
      %69 = vector.broadcast %68 : vector<1x128xf32> to vector<8x128xf32>
      %70 = arith.mulf %69, %34 : vector<8x128xf32>
      %71 = math.exp %70 : vector<8x128xf32>
      %72 = vector.extract_strided_slice %50 {offsets = [0, 0], sizes = [1, 128], strides = [1, 1]} : vector<8x128xf32> to vector<1x128xf32>
      %73 = vector.broadcast %62 : vector<8x1xf32> to vector<8x128xf32>
      %74 = vector.broadcast %72 : vector<1x128xf32> to vector<8x128xf32>
      %75 = arith.mulf %73, %74 : vector<8x128xf32>
      %76 = arith.mulf %71, %arg15 : vector<8x128xf32>
      %77 = arith.addf %76, %75 : vector<8x128xf32>
      %78 = vector.broadcast %67 : vector<8x1xf32> to vector<8x128xf32>
      %79 = arith.mulf %78, %77 : vector<8x128xf32>
      %cst_38 = arith.constant dense<0.000000e+00> : vector<128xf32>
      %80 = vector.multi_reduction <add>, %79, %cst_38 [0] : vector<8x128xf32> to vector<128xf32>
      %81 = vector.shape_cast %80 : vector<128xf32> to vector<1x128xf32>
      %82 = vector.extract_strided_slice %55 {offsets = [1, 0], sizes = [1, 128], strides = [1, 1]} : vector<8x128xf32> to vector<1x128xf32>
      %83 = vector.broadcast %82 : vector<1x128xf32> to vector<8x128xf32>
      %84 = arith.mulf %83, %40 : vector<8x128xf32>
      %cst_39 = arith.constant dense<0.000000e+00> : vector<8xf32>
      %85 = vector.multi_reduction <add>, %84, %cst_39 [1] : vector<8x128xf32> to vector<8xf32>
      %86 = vector.shape_cast %85 : vector<8xf32> to vector<8x1xf32>
      %87 = vector.extract_strided_slice %57 {offsets = [1, 0], sizes = [1, 128], strides = [1, 1]} : vector<8x128xf32> to vector<1x128xf32>
      %88 = vector.broadcast %87 : vector<1x128xf32> to vector<8x128xf32>
      %89 = arith.mulf %88, %40 : vector<8x128xf32>
      %cst_40 = arith.constant dense<0.000000e+00> : vector<8xf32>
      %90 = vector.multi_reduction <add>, %89, %cst_40 [1] : vector<8x128xf32> to vector<8xf32>
      %91 = vector.shape_cast %90 : vector<8xf32> to vector<8x1xf32>
      %92 = vector.extract_strided_slice %48 {offsets = [1, 0], sizes = [1, 128], strides = [1, 1]} : vector<8x128xf32> to vector<1x128xf32>
      %93 = vector.broadcast %92 : vector<1x128xf32> to vector<8x128xf32>
      %94 = arith.mulf %93, %34 : vector<8x128xf32>
      %95 = math.exp %94 : vector<8x128xf32>
      %96 = vector.extract_strided_slice %50 {offsets = [1, 0], sizes = [1, 128], strides = [1, 1]} : vector<8x128xf32> to vector<1x128xf32>
      %97 = vector.broadcast %86 : vector<8x1xf32> to vector<8x128xf32>
      %98 = vector.broadcast %96 : vector<1x128xf32> to vector<8x128xf32>
      %99 = arith.mulf %97, %98 : vector<8x128xf32>
      %100 = arith.mulf %95, %77 : vector<8x128xf32>
      %101 = arith.addf %100, %99 : vector<8x128xf32>
      %102 = vector.broadcast %91 : vector<8x1xf32> to vector<8x128xf32>
      %103 = arith.mulf %102, %101 : vector<8x128xf32>
      %cst_41 = arith.constant dense<0.000000e+00> : vector<128xf32>
      %104 = vector.multi_reduction <add>, %103, %cst_41 [0] : vector<8x128xf32> to vector<128xf32>
      %105 = vector.shape_cast %104 : vector<128xf32> to vector<1x128xf32>
      %106 = vector.extract_strided_slice %55 {offsets = [2, 0], sizes = [1, 128], strides = [1, 1]} : vector<8x128xf32> to vector<1x128xf32>
      %107 = vector.broadcast %106 : vector<1x128xf32> to vector<8x128xf32>
      %108 = arith.mulf %107, %40 : vector<8x128xf32>
      %cst_42 = arith.constant dense<0.000000e+00> : vector<8xf32>
      %109 = vector.multi_reduction <add>, %108, %cst_42 [1] : vector<8x128xf32> to vector<8xf32>
      %110 = vector.shape_cast %109 : vector<8xf32> to vector<8x1xf32>
      %111 = vector.extract_strided_slice %57 {offsets = [2, 0], sizes = [1, 128], strides = [1, 1]} : vector<8x128xf32> to vector<1x128xf32>
      %112 = vector.broadcast %111 : vector<1x128xf32> to vector<8x128xf32>
      %113 = arith.mulf %112, %40 : vector<8x128xf32>
      %cst_43 = arith.constant dense<0.000000e+00> : vector<8xf32>
      %114 = vector.multi_reduction <add>, %113, %cst_43 [1] : vector<8x128xf32> to vector<8xf32>
      %115 = vector.shape_cast %114 : vector<8xf32> to vector<8x1xf32>
      %116 = vector.extract_strided_slice %48 {offsets = [2, 0], sizes = [1, 128], strides = [1, 1]} : vector<8x128xf32> to vector<1x128xf32>
      %117 = vector.broadcast %116 : vector<1x128xf32> to vector<8x128xf32>
      %118 = arith.mulf %117, %34 : vector<8x128xf32>
      %119 = math.exp %118 : vector<8x128xf32>
      %120 = vector.extract_strided_slice %50 {offsets = [2, 0], sizes = [1, 128], strides = [1, 1]} : vector<8x128xf32> to vector<1x128xf32>
      %121 = vector.broadcast %110 : vector<8x1xf32> to vector<8x128xf32>
      %122 = vector.broadcast %120 : vector<1x128xf32> to vector<8x128xf32>
      %123 = arith.mulf %121, %122 : vector<8x128xf32>
      %124 = arith.mulf %119, %101 : vector<8x128xf32>
      %125 = arith.addf %124, %123 : vector<8x128xf32>
      %126 = vector.broadcast %115 : vector<8x1xf32> to vector<8x128xf32>
      %127 = arith.mulf %126, %125 : vector<8x128xf32>
      %cst_44 = arith.constant dense<0.000000e+00> : vector<128xf32>
      %128 = vector.multi_reduction <add>, %127, %cst_44 [0] : vector<8x128xf32> to vector<128xf32>
      %129 = vector.shape_cast %128 : vector<128xf32> to vector<1x128xf32>
      %130 = vector.extract_strided_slice %55 {offsets = [3, 0], sizes = [1, 128], strides = [1, 1]} : vector<8x128xf32> to vector<1x128xf32>
      %131 = vector.broadcast %130 : vector<1x128xf32> to vector<8x128xf32>
      %132 = arith.mulf %131, %40 : vector<8x128xf32>
      %cst_45 = arith.constant dense<0.000000e+00> : vector<8xf32>
      %133 = vector.multi_reduction <add>, %132, %cst_45 [1] : vector<8x128xf32> to vector<8xf32>
      %134 = vector.shape_cast %133 : vector<8xf32> to vector<8x1xf32>
      %135 = vector.extract_strided_slice %57 {offsets = [3, 0], sizes = [1, 128], strides = [1, 1]} : vector<8x128xf32> to vector<1x128xf32>
      %136 = vector.broadcast %135 : vector<1x128xf32> to vector<8x128xf32>
      %137 = arith.mulf %136, %40 : vector<8x128xf32>
      %cst_46 = arith.constant dense<0.000000e+00> : vector<8xf32>
      %138 = vector.multi_reduction <add>, %137, %cst_46 [1] : vector<8x128xf32> to vector<8xf32>
      %139 = vector.shape_cast %138 : vector<8xf32> to vector<8x1xf32>
      %140 = vector.extract_strided_slice %48 {offsets = [3, 0], sizes = [1, 128], strides = [1, 1]} : vector<8x128xf32> to vector<1x128xf32>
      %141 = vector.broadcast %140 : vector<1x128xf32> to vector<8x128xf32>
      %142 = arith.mulf %141, %34 : vector<8x128xf32>
      %143 = math.exp %142 : vector<8x128xf32>
      %144 = vector.extract_strided_slice %50 {offsets = [3, 0], sizes = [1, 128], strides = [1, 1]} : vector<8x128xf32> to vector<1x128xf32>
      %145 = vector.broadcast %134 : vector<8x1xf32> to vector<8x128xf32>
      %146 = vector.broadcast %144 : vector<1x128xf32> to vector<8x128xf32>
      %147 = arith.mulf %145, %146 : vector<8x128xf32>
      %148 = arith.mulf %143, %125 : vector<8x128xf32>
      %149 = arith.addf %148, %147 : vector<8x128xf32>
      %150 = vector.broadcast %139 : vector<8x1xf32> to vector<8x128xf32>
      %151 = arith.mulf %150, %149 : vector<8x128xf32>
      %cst_47 = arith.constant dense<0.000000e+00> : vector<128xf32>
      %152 = vector.multi_reduction <add>, %151, %cst_47 [0] : vector<8x128xf32> to vector<128xf32>
      %153 = vector.shape_cast %152 : vector<128xf32> to vector<1x128xf32>
      %154 = vector.extract_strided_slice %55 {offsets = [4, 0], sizes = [1, 128], strides = [1, 1]} : vector<8x128xf32> to vector<1x128xf32>
      %155 = vector.broadcast %154 : vector<1x128xf32> to vector<8x128xf32>
      %156 = arith.mulf %155, %40 : vector<8x128xf32>
      %cst_48 = arith.constant dense<0.000000e+00> : vector<8xf32>
      %157 = vector.multi_reduction <add>, %156, %cst_48 [1] : vector<8x128xf32> to vector<8xf32>
      %158 = vector.shape_cast %157 : vector<8xf32> to vector<8x1xf32>
      %159 = vector.extract_strided_slice %57 {offsets = [4, 0], sizes = [1, 128], strides = [1, 1]} : vector<8x128xf32> to vector<1x128xf32>
      %160 = vector.broadcast %159 : vector<1x128xf32> to vector<8x128xf32>
      %161 = arith.mulf %160, %40 : vector<8x128xf32>
      %cst_49 = arith.constant dense<0.000000e+00> : vector<8xf32>
      %162 = vector.multi_reduction <add>, %161, %cst_49 [1] : vector<8x128xf32> to vector<8xf32>
      %163 = vector.shape_cast %162 : vector<8xf32> to vector<8x1xf32>
      %164 = vector.extract_strided_slice %48 {offsets = [4, 0], sizes = [1, 128], strides = [1, 1]} : vector<8x128xf32> to vector<1x128xf32>
      %165 = vector.broadcast %164 : vector<1x128xf32> to vector<8x128xf32>
      %166 = arith.mulf %165, %34 : vector<8x128xf32>
      %167 = math.exp %166 : vector<8x128xf32>
      %168 = vector.extract_strided_slice %50 {offsets = [4, 0], sizes = [1, 128], strides = [1, 1]} : vector<8x128xf32> to vector<1x128xf32>
      %169 = vector.broadcast %158 : vector<8x1xf32> to vector<8x128xf32>
      %170 = vector.broadcast %168 : vector<1x128xf32> to vector<8x128xf32>
      %171 = arith.mulf %169, %170 : vector<8x128xf32>
      %172 = arith.mulf %167, %149 : vector<8x128xf32>
      %173 = arith.addf %172, %171 : vector<8x128xf32>
      %174 = vector.broadcast %163 : vector<8x1xf32> to vector<8x128xf32>
      %175 = arith.mulf %174, %173 : vector<8x128xf32>
      %cst_50 = arith.constant dense<0.000000e+00> : vector<128xf32>
      %176 = vector.multi_reduction <add>, %175, %cst_50 [0] : vector<8x128xf32> to vector<128xf32>
      %177 = vector.shape_cast %176 : vector<128xf32> to vector<1x128xf32>
      %178 = vector.extract_strided_slice %55 {offsets = [5, 0], sizes = [1, 128], strides = [1, 1]} : vector<8x128xf32> to vector<1x128xf32>
      %179 = vector.broadcast %178 : vector<1x128xf32> to vector<8x128xf32>
      %180 = arith.mulf %179, %40 : vector<8x128xf32>
      %cst_51 = arith.constant dense<0.000000e+00> : vector<8xf32>
      %181 = vector.multi_reduction <add>, %180, %cst_51 [1] : vector<8x128xf32> to vector<8xf32>
      %182 = vector.shape_cast %181 : vector<8xf32> to vector<8x1xf32>
      %183 = vector.extract_strided_slice %57 {offsets = [5, 0], sizes = [1, 128], strides = [1, 1]} : vector<8x128xf32> to vector<1x128xf32>
      %184 = vector.broadcast %183 : vector<1x128xf32> to vector<8x128xf32>
      %185 = arith.mulf %184, %40 : vector<8x128xf32>
      %cst_52 = arith.constant dense<0.000000e+00> : vector<8xf32>
      %186 = vector.multi_reduction <add>, %185, %cst_52 [1] : vector<8x128xf32> to vector<8xf32>
      %187 = vector.shape_cast %186 : vector<8xf32> to vector<8x1xf32>
      %188 = vector.extract_strided_slice %48 {offsets = [5, 0], sizes = [1, 128], strides = [1, 1]} : vector<8x128xf32> to vector<1x128xf32>
      %189 = vector.broadcast %188 : vector<1x128xf32> to vector<8x128xf32>
      %190 = arith.mulf %189, %34 : vector<8x128xf32>
      %191 = math.exp %190 : vector<8x128xf32>
      %192 = vector.extract_strided_slice %50 {offsets = [5, 0], sizes = [1, 128], strides = [1, 1]} : vector<8x128xf32> to vector<1x128xf32>
      %193 = vector.broadcast %182 : vector<8x1xf32> to vector<8x128xf32>
      %194 = vector.broadcast %192 : vector<1x128xf32> to vector<8x128xf32>
      %195 = arith.mulf %193, %194 : vector<8x128xf32>
      %196 = arith.mulf %191, %173 : vector<8x128xf32>
      %197 = arith.addf %196, %195 : vector<8x128xf32>
      %198 = vector.broadcast %187 : vector<8x1xf32> to vector<8x128xf32>
      %199 = arith.mulf %198, %197 : vector<8x128xf32>
      %cst_53 = arith.constant dense<0.000000e+00> : vector<128xf32>
      %200 = vector.multi_reduction <add>, %199, %cst_53 [0] : vector<8x128xf32> to vector<128xf32>
      %201 = vector.shape_cast %200 : vector<128xf32> to vector<1x128xf32>
      %202 = vector.extract_strided_slice %55 {offsets = [6, 0], sizes = [1, 128], strides = [1, 1]} : vector<8x128xf32> to vector<1x128xf32>
      %203 = vector.broadcast %202 : vector<1x128xf32> to vector<8x128xf32>
      %204 = arith.mulf %203, %40 : vector<8x128xf32>
      %cst_54 = arith.constant dense<0.000000e+00> : vector<8xf32>
      %205 = vector.multi_reduction <add>, %204, %cst_54 [1] : vector<8x128xf32> to vector<8xf32>
      %206 = vector.shape_cast %205 : vector<8xf32> to vector<8x1xf32>
      %207 = vector.extract_strided_slice %57 {offsets = [6, 0], sizes = [1, 128], strides = [1, 1]} : vector<8x128xf32> to vector<1x128xf32>
      %208 = vector.broadcast %207 : vector<1x128xf32> to vector<8x128xf32>
      %209 = arith.mulf %208, %40 : vector<8x128xf32>
      %cst_55 = arith.constant dense<0.000000e+00> : vector<8xf32>
      %210 = vector.multi_reduction <add>, %209, %cst_55 [1] : vector<8x128xf32> to vector<8xf32>
      %211 = vector.shape_cast %210 : vector<8xf32> to vector<8x1xf32>
      %212 = vector.extract_strided_slice %48 {offsets = [6, 0], sizes = [1, 128], strides = [1, 1]} : vector<8x128xf32> to vector<1x128xf32>
      %213 = vector.broadcast %212 : vector<1x128xf32> to vector<8x128xf32>
      %214 = arith.mulf %213, %34 : vector<8x128xf32>
      %215 = math.exp %214 : vector<8x128xf32>
      %216 = vector.extract_strided_slice %50 {offsets = [6, 0], sizes = [1, 128], strides = [1, 1]} : vector<8x128xf32> to vector<1x128xf32>
      %217 = vector.broadcast %206 : vector<8x1xf32> to vector<8x128xf32>
      %218 = vector.broadcast %216 : vector<1x128xf32> to vector<8x128xf32>
      %219 = arith.mulf %217, %218 : vector<8x128xf32>
      %220 = arith.mulf %215, %197 : vector<8x128xf32>
      %221 = arith.addf %220, %219 : vector<8x128xf32>
      %222 = vector.broadcast %211 : vector<8x1xf32> to vector<8x128xf32>
      %223 = arith.mulf %222, %221 : vector<8x128xf32>
      %cst_56 = arith.constant dense<0.000000e+00> : vector<128xf32>
      %224 = vector.multi_reduction <add>, %223, %cst_56 [0] : vector<8x128xf32> to vector<128xf32>
      %225 = vector.shape_cast %224 : vector<128xf32> to vector<1x128xf32>
      %226 = vector.extract_strided_slice %55 {offsets = [7, 0], sizes = [1, 128], strides = [1, 1]} : vector<8x128xf32> to vector<1x128xf32>
      %227 = vector.broadcast %226 : vector<1x128xf32> to vector<8x128xf32>
      %228 = arith.mulf %227, %40 : vector<8x128xf32>
      %cst_57 = arith.constant dense<0.000000e+00> : vector<8xf32>
      %229 = vector.multi_reduction <add>, %228, %cst_57 [1] : vector<8x128xf32> to vector<8xf32>
      %230 = vector.shape_cast %229 : vector<8xf32> to vector<8x1xf32>
      %231 = vector.extract_strided_slice %57 {offsets = [7, 0], sizes = [1, 128], strides = [1, 1]} : vector<8x128xf32> to vector<1x128xf32>
      %232 = vector.broadcast %231 : vector<1x128xf32> to vector<8x128xf32>
      %233 = arith.mulf %232, %40 : vector<8x128xf32>
      %cst_58 = arith.constant dense<0.000000e+00> : vector<8xf32>
      %234 = vector.multi_reduction <add>, %233, %cst_58 [1] : vector<8x128xf32> to vector<8xf32>
      %235 = vector.shape_cast %234 : vector<8xf32> to vector<8x1xf32>
      %236 = vector.extract_strided_slice %48 {offsets = [7, 0], sizes = [1, 128], strides = [1, 1]} : vector<8x128xf32> to vector<1x128xf32>
      %237 = vector.broadcast %236 : vector<1x128xf32> to vector<8x128xf32>
      %238 = arith.mulf %237, %34 : vector<8x128xf32>
      %239 = math.exp %238 : vector<8x128xf32>
      %240 = vector.extract_strided_slice %50 {offsets = [7, 0], sizes = [1, 128], strides = [1, 1]} : vector<8x128xf32> to vector<1x128xf32>
      %241 = vector.broadcast %230 : vector<8x1xf32> to vector<8x128xf32>
      %242 = vector.broadcast %240 : vector<1x128xf32> to vector<8x128xf32>
      %243 = arith.mulf %241, %242 : vector<8x128xf32>
      %244 = arith.mulf %239, %221 : vector<8x128xf32>
      %245 = arith.addf %244, %243 : vector<8x128xf32>
      %246 = vector.broadcast %235 : vector<8x1xf32> to vector<8x128xf32>
      %247 = arith.mulf %246, %245 : vector<8x128xf32>
      %cst_59 = arith.constant dense<0.000000e+00> : vector<128xf32>
      %248 = vector.multi_reduction <add>, %247, %cst_59 [0] : vector<8x128xf32> to vector<128xf32>
      %249 = vector.shape_cast %248 : vector<128xf32> to vector<1x128xf32>
      %250 = tpu.concatenate %81, %105, %129, %153, %177, %201, %225, %249 in 0 : vector<1x128xf32>, vector<1x128xf32>, vector<1x128xf32>, vector<1x128xf32>, vector<1x128xf32>, vector<1x128xf32>, vector<1x128xf32>, vector<1x128xf32> -> vector<8x128xf32>
      %251 = vector.broadcast %35 : vector<1x128xf32> to vector<8x128xf32>
      %252 = arith.mulf %251, %53 : vector<8x128xf32>
      %253 = arith.addf %250, %252 : vector<8x128xf32>
      %c0_60 = arith.constant 0 : index
      %254 = arith.index_cast %46 : i32 to index
      %c0_61 = arith.constant 0 : index
      %255 = vector.load %arg8[%c0_60, %254, %c0_61] : memref<1x16x128xf32, #tpu.memory_space<vmem>>, vector<1x8x128xf32>
      %256 = vector.shape_cast %255 : vector<1x8x128xf32> to vector<8x128xf32>
      %257 = vector.shape_cast %253 : vector<8x128xf32> to vector<1x8x128xf32>
      tpu.vector_store %arg8[%c0_60, %254, %c0_61], %257 {strides = array<i32>} : memref<1x16x128xf32, #tpu.memory_space<vmem>>, vector<1x8x128xf32>,
      scf.yield %245 : vector<8x128xf32>
    }
    %c2_i32_27 = arith.constant 2 : i32
    %c0_28 = arith.constant 0 : index
    %c0_29 = arith.constant 0 : index
    %44 = vector.load %arg9[%c0_28, %c0_29] : memref<8x128xf32, #tpu.memory_space<vmem>>, vector<8x128xf32>
    tpu.vector_store %arg9[%c0_28, %c0_29], %43 {strides = array<i32>} : memref<8x128xf32, #tpu.memory_space<vmem>>, vector<8x128xf32>,
    return
  }
  func.func @transform_0(%arg0: i32, %arg1: i32) -> (i32, i32, i32) {
    %c0_i32 = arith.constant 0 : i32
    %c0_i32_0 = arith.constant 0 : i32
    return %arg0, %arg1, %c0_i32 : i32, i32, i32
  }
  func.func @transform_1(%arg0: i32, %arg1: i32) -> (i32, i32) {
    %c0_i32 = arith.constant 0 : i32
    %c0_i32_0 = arith.constant 0 : i32
    %c0_i32_1 = arith.constant 0 : i32
    return %c0_i32, %c0_i32_0 : i32, i32
  }
  func.func @transform_2(%arg0: i32, %arg1: i32) -> (i32, i32) {
    %c0_i32 = arith.constant 0 : i32
    %c0_i32_0 = arith.constant 0 : i32
    %c0_i32_1 = arith.constant 0 : i32
    return %c0_i32, %c0_i32_0 : i32, i32
  }
  func.func @transform_3(%arg0: i32, %arg1: i32) -> (i32, i32) {
    %c0_i32 = arith.constant 0 : i32
    %c0_i32_0 = arith.constant 0 : i32
    %c0_i32_1 = arith.constant 0 : i32
    return %c0_i32, %c0_i32_0 : i32, i32
  }
  func.func @transform_4(%arg0: i32, %arg1: i32) -> (i32, i32) {
    %c0_i32 = arith.constant 0 : i32
    %c0_i32_0 = arith.constant 0 : i32
    %c0_i32_1 = arith.constant 0 : i32
    return %c0_i32, %c0_i32_0 : i32, i32
  }
  func.func @transform_5(%arg0: i32, %arg1: i32) -> (i32, i32) {
    %c0_i32 = arith.constant 0 : i32
    %c0_i32_0 = arith.constant 0 : i32
    %c0_i32_1 = arith.constant 0 : i32
    return %c0_i32, %c0_i32_0 : i32, i32
  }
  func.func @transform_6(%arg0: i32, %arg1: i32) -> (i32, i32, i32) {
    %c0_i32 = arith.constant 0 : i32
    %c0_i32_0 = arith.constant 0 : i32
    return %arg0, %arg1, %c0_i32 : i32, i32, i32
  }
}

</mosaic_0001>

<llo_original>
// kernel: tpu_custom_call.1
$region0: #{tpu_custom_call.1}
  #allocation0 [shape = 'u32[]', space=smem, size = 0x4, offset = 0x4, fixed_abs, tag = 'smem constant byte address 0x4 - core index']
  #allocation1 [shape = 'u32[144,128]{1,0:T(1,128)}', space=vmem, size = 0x12000, scoped, tag = 'internal scratch']
  #allocation2 [shape = 'f32[8,128]{1,0:T(8,128)}', space=vmem, size = 0x1000, scoped, tag = 'scratch operand']
  #allocation3 [shape = 'f32[16,128]{1,0:T(8,128)}', space=vmem, size = 0x2000, scoped, tag = 'scratch operand']
  #allocation4 [shape = 'f32[16,128]{1,0:T(8,128)}', space=vmem, size = 0x2000, scoped, tag = 'scratch operand']
  #allocation5 [shape = 'f32[16,128]{1,0:T(8,128)}', space=vmem, size = 0x2000, scoped, tag = 'scratch operand']
  #allocation6 [shape = 'f32[16,128]{1,0:T(8,128)}', space=vmem, size = 0x2000, scoped, tag = 'scratch operand']
  %s0 = inlined_call_operand.hbm [shape: f32[2,32,128], index: 0, kind: input, shape index: {}]
  %s1 = inlined_call_operand.hbm [shape: f32[128,384], index: 1, kind: input, shape index: {}]
  %s2 = inlined_call_operand.hbm [shape: f32[128,128], index: 2, kind: input, shape index: {}]
  %s3 = inlined_call_operand.vmem [shape: f32[1,128], index: 3, kind: input, shape index: {}]
  %s4 = inlined_call_operand.hbm [shape: f32[8,128], index: 4, kind: input, shape index: {}]
  %s5 = inlined_call_operand.vmem [shape: f32[1,128], index: 5, kind: input, shape index: {}]
  %s6 = inlined_call_operand.hbm [shape: f32[2,32,128], index: 6, kind: output, shape index: {}]
  %s7 = sld [smem:[#allocation0]]
  $region84: #{tpu_custom_call.1} parent=0
    _
  %s9 = ssub.s32 1, %s7
  %s10 = scalar_select 0, %s9, %s7
  $region1: #{tpu_custom_call.1} parent=0
    #allocation7 [shape = 'u8[16384]{0}', space=vmem, size = 0x4000, scoped, tag = 'input window, operand 0']
    #allocation8 [shape = 's32[2]{0}', space=sflag, size = 0x8, scoped, tag = 'scoped memory for tpu_custom_call.1']
    #allocation9 [shape = 's32[2]{0}', space=sflag, size = 0x8, scoped, tag = 'scoped memory for tpu_custom_call.1']
    #allocation10 [shape = 'u8[196608]{0}', space=vmem, size = 0x30000, scoped, tag = 'input window, operand 1, single buffered']
    #allocation11 [shape = 's32[1]{0}', space=sflag, size = 0x4, scoped, tag = 'scoped memory for tpu_custom_call.1']
    #allocation12 [shape = 'u8[65536]{0}', space=vmem, size = 0x10000, scoped, tag = 'input window, operand 2, single buffered']
    #allocation13 [shape = 'u8[4096]{0}', space=vmem, size = 0x1000, scoped, tag = 'input window, operand 4, single buffered']
    #allocation14 [shape = 's32[1]{0}', space=sflag, size = 0x4, scoped, tag = 'scoped memory for tpu_custom_call.1']
    #allocation15 [shape = 'u8[16384]{0}', space=vmem, size = 0x4000, scoped, tag = 'output window, operand 0']
    %11 = vsyncpa [#allocation8], 0
    %s12 = scalar_lea.sflag [#allocation8], 1
    %13 = vsyncpa %s12, 0
    %14 = vsyncpa [#allocation11], 0
    %15 = vsyncpa [#allocation14], 0
    %16 = vsyncpa [#allocation9], 0
    %s17 = scalar_lea.sflag [#allocation9], 1
    %18 = vsyncpa %s17, 0
    loop: start=0, step=1, limit=6
    $region2: #{tpu_custom_call.1} parent=1 // loop_pre_header
      _
    $region3: #{tpu_custom_call.1} parent=1 // loop_header
      %s20 = sphi 0, %s24
      %p21 = scmp.ge.s32.totalorder %s20, 6
      %s27 = sphi 0, %s39
      %s28 = sphi 0, %s35
      %s29 = sphi 0, %s27
      %s30 = sphi 0, %s28
      %s31 = sphi 0, %s29
      %s32 = sphi 0, %s30
      %s44 = sphi 0, %s46
      %s47 = sphi 0, %s44
      %s48 = sphi 0, %s47
      %s64 = sphi 0, %s48
      %s68 = sphi 0, %s68
      %s70 = sphi 0, %s68
      %s71 = sphi 0, %s70
      %s85 = sphi 0, %s71
      %s89 = sphi 0, %s89
      %s91 = sphi 0, %s89
      %s92 = sphi 0, %s91
      %s106 = sphi 0, %s92
      %s110 = sphi 0, %s110
      %s112 = sphi 0, %s110
      %s113 = sphi 0, %s112
      %s127 = sphi 0, %s113
      %s131 = sphi 0, %s131
      %s133 = sphi 0, %s131
      %s134 = sphi 0, %s133
      %s148 = sphi 0, %s134
      %s152 = sphi 0, %s152
      %s154 = sphi 0, %s152
      %s155 = sphi 0, %s154
      %s169 = sphi 0, %s155
      %s177 = sphi 0, %s179
      %s180 = sphi 0, %s177
      %s181 = sphi 0, %s180
      %s197 = sphi 0, %s181
    $region4: #{tpu_custom_call.1} parent=1 // loop_header_branch
      %23 = sbr.rel (%p21) target = $region8
    $region5: #{tpu_custom_call.1} parent=1 // loop_body
      %s25 = ssub.s32 %s20, 1
      %s26 = ssub.s32 %s20, 2
      %s33 = sadd.s32 1, %s28
      %p34 = scmp.ge.s32.totalorder %s33, 2
      %s35 = scalar_select %p34, 0, %s33
      %s36 = sadd.s32 1, %s27
      %s37 = scalar_select %p34, %s36, %s27
      %p38 = scmp.ge.s32.totalorder %s37, 2
      %s39 = scalar_select %p38, 0, %s37
      %s40 = ssub.s32 %s27, %s39
      %s41 = ssub.s32 %s28, %s35
      %s42 = sor.u32 %s40, %s41
      %p43 = scmp.eq.s32.totalorder %s42, 0
      %s45 = sadd.s32 %s44, 1
      %s46 = scalar_select %p43, %s44, %s45
      %p49 = pneg %p43
      %p50 = scmp.eq.s32.totalorder %s20, 3
      %p51 = por %p49, %p50
      %p52 = scmp.ne.s32.totalorder %s44, %s47
      %p53 = scmp.eq.s32.totalorder %s20, 0
      %p54 = por %p52, %p53
      %p55 = scmp.ne.s32.totalorder %s44, %s47
      %p56 = scmp.eq.s32.totalorder %s25, 3
      %p57 = por %p55, %p56
      %p58 = scmp.ne.s32.totalorder %s47, %s48
      %p59 = scmp.eq.s32.totalorder %s25, 0
      %p60 = por %p58, %p59
      %p61 = scmp.ne.s32.totalorder %s47, %s48
      %p62 = scmp.eq.s32.totalorder %s26, 3
      %p63 = por %p61, %p62
      %p65 = scmp.ne.s32.totalorder %s48, %s64
      %p66 = scmp.eq.s32.totalorder %s26, 0
      %p67 = por %p65, %p66
      %s69 = sadd.s32 %s68, 1
      %p72 = scmp.eq.s32.totalorder %s20, 3
      %p73 = scmp.ne.s32.totalorder %s68, %s70
      %p74 = scmp.eq.s32.totalorder %s20, 0
      %p75 = por %p73, %p74
      %p76 = scmp.ne.s32.totalorder %s68, %s70
      %p77 = scmp.eq.s32.totalorder %s25, 3
      %p78 = por %p76, %p77
      %p79 = scmp.ne.s32.totalorder %s70, %s71
      %p80 = scmp.eq.s32.totalorder %s25, 0
      %p81 = por %p79, %p80
      %p82 = scmp.ne.s32.totalorder %s70, %s71
      %p83 = scmp.eq.s32.totalorder %s26, 3
      %p84 = por %p82, %p83
      %p86 = scmp.ne.s32.totalorder %s71, %s85
      %p87 = scmp.eq.s32.totalorder %s26, 0
      %p88 = por %p86, %p87
      %s90 = sadd.s32 %s89, 1
      %p93 = scmp.eq.s32.totalorder %s20, 3
      %p94 = scmp.ne.s32.totalorder %s89, %s91
      %p95 = scmp.eq.s32.totalorder %s20, 0
      %p96 = por %p94, %p95
      %p97 = scmp.ne.s32.totalorder %s89, %s91
      %p98 = scmp.eq.s32.totalorder %s25, 3
      %p99 = por %p97, %p98
      %p100 = scmp.ne.s32.totalorder %s91, %s92
      %p101 = scmp.eq.s32.totalorder %s25, 0
      %p102 = por %p100, %p101
      %p103 = scmp.ne.s32.totalorder %s91, %s92
      %p104 = scmp.eq.s32.totalorder %s26, 3
      %p105 = por %p103, %p104
      %p107 = scmp.ne.s32.totalorder %s92, %s106
      %p108 = scmp.eq.s32.totalorder %s26, 0
      %p109 = por %p107, %p108
      %s111 = sadd.s32 %s110, 1
      %p114 = scmp.eq.s32.totalorder %s20, 3
      %p115 = scmp.ne.s32.totalorder %s110, %s112
      %p116 = scmp.eq.s32.totalorder %s20, 0
      %p117 = por %p115, %p116
      %p118 = scmp.ne.s32.totalorder %s110, %s112
      %p119 = scmp.eq.s32.totalorder %s25, 3
      %p120 = por %p118, %p119
      %p121 = scmp.ne.s32.totalorder %s112, %s113
      %p122 = scmp.eq.s32.totalorder %s25, 0
      %p123 = por %p121, %p122
      %p124 = scmp.ne.s32.totalorder %s112, %s113
      %p125 = scmp.eq.s32.totalorder %s26, 3
      %p126 = por %p124, %p125
      %p128 = scmp.ne.s32.totalorder %s113, %s127
      %p129 = scmp.eq.s32.totalorder %s26, 0
      %p130 = por %p128, %p129
      %s132 = sadd.s32 %s131, 1
      %p135 = scmp.eq.s32.totalorder %s20, 3
      %p136 = scmp.ne.s32.totalorder %s131, %s133
      %p137 = scmp.eq.s32.totalorder %s20, 0
      %p138 = por %p136, %p137
      %p139 = scmp.ne.s32.totalorder %s131, %s133
      %p140 = scmp.eq.s32.totalorder %s25, 3
      %p141 = por %p139, %p140
      %p142 = scmp.ne.s32.totalorder %s133, %s134
      %p143 = scmp.eq.s32.totalorder %s25, 0
      %p144 = por %p142, %p143
      %p145 = scmp.ne.s32.totalorder %s133, %s134
      %p146 = scmp.eq.s32.totalorder %s26, 3
      %p147 = por %p145, %p146
      %p149 = scmp.ne.s32.totalorder %s134, %s148
      %p150 = scmp.eq.s32.totalorder %s26, 0
      %p151 = por %p149, %p150
      %s153 = sadd.s32 %s152, 1
      %p156 = scmp.eq.s32.totalorder %s20, 3
      %p157 = scmp.ne.s32.totalorder %s152, %s154
      %p158 = scmp.eq.s32.totalorder %s20, 0
      %p159 = por %p157, %p158
      %p160 = scmp.ne.s32.totalorder %s152, %s154
      %p161 = scmp.eq.s32.totalorder %s25, 3
      %p162 = por %p160, %p161
      %p163 = scmp.ne.s32.totalorder %s154, %s155
      %p164 = scmp.eq.s32.totalorder %s25, 0
      %p165 = por %p163, %p164
      %p166 = scmp.ne.s32.totalorder %s154, %s155
      %p167 = scmp.eq.s32.totalorder %s26, 3
      %p168 = por %p166, %p167
      %p170 = scmp.ne.s32.totalorder %s155, %s169
      %p171 = scmp.eq.s32.totalorder %s26, 0
      %p172 = por %p170, %p171
      %s173 = ssub.s32 %s27, %s39
      %s174 = ssub.s32 %s28, %s35
      %s175 = sor.u32 %s173, %s174
      %p176 = scmp.eq.s32.totalorder %s175, 0
      %s178 = sadd.s32 %s177, 1
      %s179 = scalar_select %p176, %s177, %s178
      %p182 = pneg %p176
      %p183 = scmp.eq.s32.totalorder %s20, 3
      %p184 = por %p182, %p183
      %p185 = scmp.ne.s32.totalorder %s177, %s180
      %p186 = scmp.eq.s32.totalorder %s20, 0
      %p187 = por %p185, %p186
      %p188 = scmp.ne.s32.totalorder %s177, %s180
      %p189 = scmp.eq.s32.totalorder %s25, 3
      %p190 = por %p188, %p189
      %p191 = scmp.ne.s32.totalorder %s180, %s181
      %p192 = scmp.eq.s32.totalorder %s25, 0
      %p193 = por %p191, %p192
      %p194 = scmp.ne.s32.totalorder %s180, %s181
      %p195 = scmp.eq.s32.totalorder %s26, 3
      %p196 = por %p194, %p195
      %p198 = scmp.ne.s32.totalorder %s181, %s197
      %p199 = scmp.eq.s32.totalorder %s26, 0
      %p200 = por %p198, %p199
      %p201 = scmp.le.s32.totalorder 1, %s20
      %p202 = scmp.lt.s32.totalorder %s20, 5
      %p203 = pnand %p201, %p202
      %p204 = pneg %p203
      // Predicated region
      $region9: #{tpu_custom_call.1} parent=5 // pred_check
        _
      $region10: #{tpu_custom_call.1} parent=5 // pred_check_branch
        %206 = sbr.rel (%p203) target = $region12
      $region11: #{tpu_custom_call.1} parent=5 // pred_region
        %s207 = ssub.s32 %s20, 1
        // Predicated region
        $region13: #{tpu_custom_call.1} parent=11 // pred_check
          %p208 = pneg %p81
        $region14: #{tpu_custom_call.1} parent=11 // pred_check_branch
          %210 = sbr.rel (%p208) target = $region16
        $region15: #{tpu_custom_call.1} parent=11 // pred_region
          %s212 = ssub.s32 6144, 6144
          %213 = vsyncadd [#allocation11], %s212
          %s214 = sshll.u32 [#allocation10], 4
          %s215 = int_to_ptr.vmem [resolvable:$true] %s214
          %220 = dma.hbm_to_vmem [thread:$0]  %s1, 6144, %s215, [#allocation11], 384, 384, 24
        $region16: #{tpu_custom_call.1} parent=11 // pred_fallthru
          _
        // Predicated region
        $region17: #{tpu_custom_call.1} parent=11 // pred_check
          %p221 = pneg %p102
        $region18: #{tpu_custom_call.1} parent=11 // pred_check_branch
          %223 = sbr.rel (%p221) target = $region20
        $region19: #{tpu_custom_call.1} parent=11 // pred_region
          %s225 = ssub.s32 2048, 2048
          %226 = vsyncadd [#allocation11], %s225
          %s227 = sshll.u32 [#allocation12], 4
          %s228 = int_to_ptr.vmem [resolvable:$true] %s227
          %233 = dma.hbm_to_vmem [thread:$0]  %s2, 2048, %s228, [#allocation11], 128, 128, 8
        $region20: #{tpu_custom_call.1} parent=11 // pred_fallthru
          _
        // Predicated region
        $region21: #{tpu_custom_call.1} parent=11 // pred_check
          %p234 = pneg %p123
        $region22: #{tpu_custom_call.1} parent=11 // pred_check_branch
          %236 = sbr.rel (%p234) target = $region24
        $region23: #{tpu_custom_call.1} parent=11 // pred_region
          _
        $region24: #{tpu_custom_call.1} parent=11 // pred_fallthru
          _
        // Predicated region
        $region25: #{tpu_custom_call.1} parent=11 // pred_check
          %p237 = pneg %p144
        $region26: #{tpu_custom_call.1} parent=11 // pred_check_branch
          %239 = sbr.rel (%p237) target = $region28
        $region27: #{tpu_custom_call.1} parent=11 // pred_region
          %s241 = ssub.s32 128, 128
          %242 = vsyncadd [#allocation14], %s241
          %s244 = sshll.u32 [#allocation13], 4
          %s245 = int_to_ptr.vmem [resolvable:$true] %s244
          %247 = dma.hbm_to_vmem [thread:$0]  %s4, 128, %s245, [#allocation14]
        $region28: #{tpu_custom_call.1} parent=11 // pred_fallthru
          _
        // Predicated region
        $region29: #{tpu_custom_call.1} parent=11 // pred_check
          %p248 = pneg %p165
        $region30: #{tpu_custom_call.1} parent=11 // pred_check_branch
          %250 = sbr.rel (%p248) target = $region32
        $region31: #{tpu_custom_call.1} parent=11 // pred_region
          _
        $region32: #{tpu_custom_call.1} parent=11 // pred_fallthru
          _
      $region12: #{tpu_custom_call.1} parent=5 // pred_fallthru
        _
      %p251 = scmp.lt.s32.totalorder %s20, 4
      // Predicated region
      $region33: #{tpu_custom_call.1} parent=5 // pred_check
        %p252 = pneg %p251
      $region34: #{tpu_custom_call.1} parent=5 // pred_check_branch
        %254 = sbr.rel (%p252) target = $region36
      $region35: #{tpu_custom_call.1} parent=5 // pred_region
        // Predicated region
        $region37: #{tpu_custom_call.1} parent=35 // pred_check
          %p255 = pneg %p54
        $region38: #{tpu_custom_call.1} parent=35 // pred_check_branch
          %257 = sbr.rel (%p255) target = $region40
        $region39: #{tpu_custom_call.1} parent=35 // pred_region
          %s258 = sand.u32 %s44, 1
          %s259 = scalar_lea.sflag [#allocation8], %s258
          %s260 = sand.u32 %s44, 1
          %s261 = smul.addr %s260, 16
          %s262 = scalar_lea.vmem [#allocation7], %s261
          %s263 = smul.u32 2, %s28
          %s265 = ssub.s32 256, 256
          %266 = vsyncadd %s259, %s265
          %s267 = smul.addr %s27, 4
          %s268 = sadd.s32 %s263, %s267
          %s269 = smul.addr %s268, 128
          %s270 = scalar_lea.hbm %s0, %s269
          %s271 = sshll.u32 %s262, 4
          %s272 = int_to_ptr.vmem [resolvable:$true] %s271
          %277 = dma.hbm_to_vmem [thread:$0]  %s270, 256, %s272, %s259, 128, 128, 8
        $region40: #{tpu_custom_call.1} parent=35 // pred_fallthru
          _
      $region36: #{tpu_custom_call.1} parent=5 // pred_fallthru
        _
      %p278 = scmp.le.s32.totalorder 1, %s20
      %p279 = scmp.lt.s32.totalorder %s20, 5
      %p280 = pnand %p278, %p279
      %p281 = pneg %p280
      // Predicated region
      $region41: #{tpu_custom_call.1} parent=5 // pred_check
        _
      $region42: #{tpu_custom_call.1} parent=5 // pred_check_branch
        %283 = sbr.rel (%p280) target = $region44
      $region43: #{tpu_custom_call.1} parent=5 // pred_region
        %s284 = ssub.s32 %s20, 1
        %s285 = sand.u32 %s47, 1
        %s286 = scalar_lea.sflag [#allocation8], %s285
        %s287 = sand.u32 %s47, 1
        %s288 = smul.addr %s287, 16
        %s289 = scalar_lea.vmem [#allocation7], %s288
        // Predicated region
        $region45: #{tpu_custom_call.1} parent=43 // pred_check
          %p290 = pneg %p60
        $region46: #{tpu_custom_call.1} parent=43 // pred_check_branch
          %292 = sbr.rel (%p290) target = $region48
        $region47: #{tpu_custom_call.1} parent=43 // pred_region
          %293 = dma.done %s286, 256
        $region48: #{tpu_custom_call.1} parent=43 // pred_fallthru
          _
        // Predicated region
        $region49: #{tpu_custom_call.1} parent=43 // pred_check
          %p294 = pneg %p81
        $region50: #{tpu_custom_call.1} parent=43 // pred_check_branch
          %296 = sbr.rel (%p294) target = $region52
        $region51: #{tpu_custom_call.1} parent=43 // pred_region
          %297 = dma.done [#allocation11], 6144
        $region52: #{tpu_custom_call.1} parent=43 // pred_fallthru
          _
        // Predicated region
        $region53: #{tpu_custom_call.1} parent=43 // pred_check
          %p298 = pneg %p102
        $region54: #{tpu_custom_call.1} parent=43 // pred_check_branch
          %300 = sbr.rel (%p298) target = $region56
        $region55: #{tpu_custom_call.1} parent=43 // pred_region
          %301 = dma.done [#allocation11], 2048
        $region56: #{tpu_custom_call.1} parent=43 // pred_fallthru
          _
        // Predicated region
        $region57: #{tpu_custom_call.1} parent=43 // pred_check
          %p302 = pneg %p144
        $region58: #{tpu_custom_call.1} parent=43 // pred_check_branch
          %304 = sbr.rel (%p302) target = $region60
        $region59: #{tpu_custom_call.1} parent=43 // pred_region
          %305 = dma.done [#allocation14], 128
        $region60: #{tpu_custom_call.1} parent=43 // pred_fallthru
          _
        %s306 = sand.u32 %s47, 1
        %s307 = scalar_lea.sflag [#allocation8], %s306
        %s308 = sand.u32 %s47, 1
        %s309 = smul.addr %s308, 16
        %s310 = scalar_lea.vmem [#allocation7], %s309
        %p311 = pneg %p60
        %p312 = pneg %p57
        %p313 = pneg %p81
        %p314 = pneg %p78
        %p315 = pneg %p102
        %p316 = pneg %p99
        %p317 = pneg %p123
        %p318 = pneg %p120
        %p319 = pneg %p144
        %p320 = pneg %p141
        %p321 = pneg %p165
        %p322 = pneg %p162
        %p323 = pneg %p193
        %p324 = pneg %p190
        %s325 = sand.u32 %s180, 1
        %s326 = scalar_lea.sflag [#allocation9], %s325
        %s327 = sand.u32 %s180, 1
        %s328 = smul.addr %s327, 16
        %s329 = scalar_lea.vmem [#allocation15], %s328
        %s330 = smul.u32 2, %s30
        %s331 = smul.u32 2, %s30
        %p332 = scmp.eq.s32.totalorder %s30, 0
        // Predicated region
        $region61: #{tpu_custom_call.1} parent=43 // pred_check
          %p333 = pneg %p332
        $region62: #{tpu_custom_call.1} parent=43 // pred_check_branch
          %335 = sbr.rel (%p333) target = $region64
        $region63: #{tpu_custom_call.1} parent=43 // pred_region
          %336 = vst [vmem:[#allocation2] sm:$0xff] 0.0
        $region64: #{tpu_custom_call.1} parent=43 // pred_fallthru
          _
        %v337 = vld [vmem:[%s289] sm:$0xff]
        %v338 = vld [vmem:[%s289 + $0x8] sm:$0xff]
        %v339 = vld [vmem:[#allocation10] sm:$0xff]
        %v340 = vld [vmem:[#allocation10 + $0x8] sm:$0xff]
        %v341 = vld [vmem:[#allocation10 + $0x10] sm:$0xff]
        %v342 = vld [vmem:[#allocation10 + $0x18] sm:$0xff]
        %v343 = vld [vmem:[#allocation10 + $0x20] sm:$0xff]
        %v344 = vld [vmem:[#allocation10 + $0x28] sm:$0xff]
        %v345 = vld [vmem:[#allocation10 + $0x30] sm:$0xff]
        %v346 = vld [vmem:[#allocation10 + $0x38] sm:$0xff]
        %v347 = vld [vmem:[#allocation10 + $0x40] sm:$0xff]
        %v348 = vld [vmem:[#allocation10 + $0x48] sm:$0xff]
        %v349 = vld [vmem:[#allocation10 + $0x50] sm:$0xff]
        %v350 = vld [vmem:[#allocation10 + $0x58] sm:$0xff]
        %v351 = vld [vmem:[#allocation10 + $0x60] sm:$0xff]
        %v352 = vld [vmem:[#allocation10 + $0x68] sm:$0xff]
        %v353 = vld [vmem:[#allocation10 + $0x70] sm:$0xff]
        %v354 = vld [vmem:[#allocation10 + $0x78] sm:$0xff]
        %v355 = vld [vmem:[#allocation10 + $0x80] sm:$0xff]
        %v356 = vld [vmem:[#allocation10 + $0x88] sm:$0xff]
        %v357 = vld [vmem:[#allocation10 + $0x90] sm:$0xff]
        %v358 = vld [vmem:[#allocation10 + $0x98] sm:$0xff]
        %v359 = vld [vmem:[#allocation10 + $0xa0] sm:$0xff]
        %v360 = vld [vmem:[#allocation10 + $0xa8] sm:$0xff]
        %v361 = vld [vmem:[#allocation10 + $0xb0] sm:$0xff]
        %v362 = vld [vmem:[#allocation10 + $0xb8] sm:$0xff]
        %v363 = vld [vmem:[#allocation10 + $0xc0] sm:$0xff]
        %v364 = vld [vmem:[#allocation10 + $0xc8] sm:$0xff]
        %v365 = vld [vmem:[#allocation10 + $0xd0] sm:$0xff]
        %v366 = vld [vmem:[#allocation10 + $0xd8] sm:$0xff]
        %v367 = vld [vmem:[#allocation10 + $0xe0] sm:$0xff]
        %v368 = vld [vmem:[#allocation10 + $0xe8] sm:$0xff]
        %v369 = vld [vmem:[#allocation10 + $0xf0] sm:$0xff]
        %v370 = vld [vmem:[#allocation10 + $0xf8] sm:$0xff]
        %v371 = vld [vmem:[#allocation10 + $0x100] sm:$0xff]
        %v372 = vld [vmem:[#allocation10 + $0x108] sm:$0xff]
        %v373 = vld [vmem:[#allocation10 + $0x110] sm:$0xff]
        %v374 = vld [vmem:[#allocation10 + $0x118] sm:$0xff]
        %v375 = vld [vmem:[#allocation10 + $0x120] sm:$0xff]
        %v376 = vld [vmem:[#allocation10 + $0x128] sm:$0xff]
        %v377 = vld [vmem:[#allocation10 + $0x130] sm:$0xff]
        %v378 = vld [vmem:[#allocation10 + $0x138] sm:$0xff]
        %v379 = vld [vmem:[#allocation10 + $0x140] sm:$0xff]
        %v380 = vld [vmem:[#allocation10 + $0x148] sm:$0xff]
        %v381 = vld [vmem:[#allocation10 + $0x150] sm:$0xff]
        %v382 = vld [vmem:[#allocation10 + $0x158] sm:$0xff]
        %v383 = vld [vmem:[#allocation10 + $0x160] sm:$0xff]
        %v384 = vld [vmem:[#allocation10 + $0x168] sm:$0xff]
        %v385 = vld [vmem:[#allocation10 + $0x170] sm:$0xff]
        %v386 = vld [vmem:[#allocation10 + $0x178] sm:$0xff]
        %387 = vmatprep.subr.mxu0 %v385
        %388 = vmatpush1.msra.mxu0 %v384
        %389 = vmatprep.subr.mxu0 %v382
        %390 = vmatpush1.msra.mxu0 %v381
        %391 = vmatprep.subr.mxu0 %v379
        %392 = vmatpush1.msra.mxu0 %v378
        %393 = vmatprep.subr.mxu0 %v376
        %394 = vmatpush1.msra.mxu0 %v375
        %395 = vmatprep.subr.mxu0 %v373
        %396 = vmatpush1.msra.mxu0 %v372
        %397 = vmatprep.subr.mxu0 %v370
        %398 = vmatpush1.msra.mxu0 %v369
        %399 = vmatprep.subr.mxu0 %v367
        %400 = vmatpush1.msra.mxu0 %v366
        %401 = vmatprep.subr.mxu0 %v364
        %402 = vmatpush1.msra.mxu0 %v363
        %403 = vmatprep.subr.mxu0 %v361
        %404 = vmatpush1.msra.mxu0 %v360
        %405 = vmatprep.subr.mxu0 %v358
        %406 = vmatpush1.msra.mxu0 %v357
        %407 = vmatprep.subr.mxu0 %v355
        %408 = vmatpush1.msra.mxu0 %v354
        %409 = vmatprep.subr.mxu0 %v352
        %410 = vmatpush1.msra.mxu0 %v351
        %411 = vmatprep.subr.mxu0 %v349
        %412 = vmatpush1.msra.mxu0 %v348
        %413 = vmatprep.subr.mxu0 %v346
        %414 = vmatpush1.msra.mxu0 %v345
        %415 = vmatprep.subr.mxu0 %v343
        %416 = vmatpush1.msra.mxu0 %v342
        %417 = vmatprep.subr.mxu0 %v340
        %418 = vmatpush1.msra.mxu0 %v339
        %419 = vmatprep.subr.mxu0 0.0
        %420 = vmatpush2.msra.mxu0 0.0
        %421 = vmatprep.subr.mxu0 0.0
        %422 = vmatpush2.msra.mxu0 0.0
        %423 = vmatprep.subr.mxu0 0.0
        %424 = vmatpush2.msra.mxu0 0.0
        %425 = vmatprep.subr.mxu0 0.0
        %426 = vmatpush2.msra.mxu0 0.0
        %427 = vmatprep.subr.mxu0 0.0
        %428 = vmatpush2.msra.mxu0 0.0
        %429 = vmatprep.subr.mxu0 0.0
        %430 = vmatpush2.msra.mxu0 0.0
        %431 = vmatprep.subr.mxu0 0.0
        %432 = vmatpush2.msra.mxu0 0.0
        %433 = vmatprep.subr.mxu0 0.0
        %434 = vmatpush2.msra.mxu0 0.0
        %435 = vmatprep.subr.mxu0 0.0
        %436 = vmatpush2.msra.mxu0 0.0
        %437 = vmatprep.subr.mxu0 0.0
        %438 = vmatpush2.msra.mxu0 0.0
        %439 = vmatprep.subr.mxu0 0.0
        %440 = vmatpush2.msra.mxu0 0.0
        %441 = vmatprep.subr.mxu0 0.0
        %442 = vmatpush2.msra.mxu0 0.0
        %443 = vmatprep.subr.mxu0 0.0
        %444 = vmatpush2.msra.mxu0 0.0
        %445 = vmatprep.subr.mxu0 0.0
        %446 = vmatpush2.msra.mxu0 0.0
        %447 = vmatprep.subr.mxu0 0.0
        %448 = vmatpush2.msra.mxu0 0.0
        %449 = vmatprep.subr.mxu0 0.0
        %450 = vmatpush2.msra.mxu0 0.0
        %451 = vmatprep.mubr.f32.mxu0 0.0
        %452 = vmatmul.mubr.f32.gmra.mxu0 %v337
        %v453 = vpop.f32.mrf.mxu0
        %v454 = vadd.f32 0.0, %v453
        %v455 = vpop.f32.mrf.mxu0
        %v456 = vadd.f32 0.0, %v455
        %457 = vmatprep.mubr.f32.mxu0 0.0
        %458 = vmatmul.mubr.f32.gmra.mxu0 %v338
        %v459 = vpop.f32.mrf.mxu0
        %v460 = vadd.f32 0.0, %v459
        %v461 = vpop.f32.mrf.mxu0
        %v462 = vadd.f32 0.0, %v461
        %463 = vdwg.mxu0
        %464 = vmatprep.subr.mxu0 0.0
        %465 = vmatpush1.msra.mxu0 %v386
        %466 = vmatprep.subr.mxu0 0.0
        %467 = vmatpush1.msra.mxu0 %v383
        %468 = vmatprep.subr.mxu0 0.0
        %469 = vmatpush1.msra.mxu0 %v380
        %470 = vmatprep.subr.mxu0 0.0
        %471 = vmatpush1.msra.mxu0 %v377
        %472 = vmatprep.subr.mxu0 0.0
        %473 = vmatpush1.msra.mxu0 %v374
        %474 = vmatprep.subr.mxu0 0.0
        %475 = vmatpush1.msra.mxu0 %v371
        %476 = vmatprep.subr.mxu0 0.0
        %477 = vmatpush1.msra.mxu0 %v368
        %478 = vmatprep.subr.mxu0 0.0
        %479 = vmatpush1.msra.mxu0 %v365
        %480 = vmatprep.subr.mxu0 0.0
        %481 = vmatpush1.msra.mxu0 %v362
        %482 = vmatprep.subr.mxu0 0.0
        %483 = vmatpush1.msra.mxu0 %v359
        %484 = vmatprep.subr.mxu0 0.0
        %485 = vmatpush1.msra.mxu0 %v356
        %486 = vmatprep.subr.mxu0 0.0
        %487 = vmatpush1.msra.mxu0 %v353
        %488 = vmatprep.subr.mxu0 0.0
        %489 = vmatpush1.msra.mxu0 %v350
        %490 = vmatprep.subr.mxu0 0.0
        %491 = vmatpush1.msra.mxu0 %v347
        %492 = vmatprep.subr.mxu0 0.0
        %493 = vmatpush1.msra.mxu0 %v344
        %494 = vmatprep.subr.mxu0 0.0
        %495 = vmatpush1.msra.mxu0 %v341
        %496 = vmatprep.subr.mxu0 0.0
        %497 = vmatpush2.msra.mxu0 0.0
        %498 = vmatprep.subr.mxu0 0.0
        %499 = vmatpush2.msra.mxu0 0.0
        %500 = vmatprep.subr.mxu0 0.0
        %501 = vmatpush2.msra.mxu0 0.0
        %502 = vmatprep.subr.mxu0 0.0
        %503 = vmatpush2.msra.mxu0 0.0
        %504 = vmatprep.subr.mxu0 0.0
        %505 = vmatpush2.msra.mxu0 0.0
        %506 = vmatprep.subr.mxu0 0.0
        %507 = vmatpush2.msra.mxu0 0.0
        %508 = vmatprep.subr.mxu0 0.0
        %509 = vmatpush2.msra.mxu0 0.0
        %510 = vmatprep.subr.mxu0 0.0
        %511 = vmatpush2.msra.mxu0 0.0
        %512 = vmatprep.subr.mxu0 0.0
        %513 = vmatpush2.msra.mxu0 0.0
        %514 = vmatprep.subr.mxu0 0.0
        %515 = vmatpush2.msra.mxu0 0.0
        %516 = vmatprep.subr.mxu0 0.0
        %517 = vmatpush2.msra.mxu0 0.0
        %518 = vmatprep.subr.mxu0 0.0
        %519 = vmatpush2.msra.mxu0 0.0
        %520 = vmatprep.subr.mxu0 0.0
        %521 = vmatpush2.msra.mxu0 0.0
        %522 = vmatprep.subr.mxu0 0.0
        %523 = vmatpush2.msra.mxu0 0.0
        %524 = vmatprep.subr.mxu0 0.0
        %525 = vmatpush2.msra.mxu0 0.0
        %526 = vmatprep.subr.mxu0 0.0
        %527 = vmatpush2.msra.mxu0 0.0
        %528 = vmatprep.mubr.f32.mxu0 0.0
        %529 = vmatmul.mubr.f32.gmra.mxu0 %v337
        %v530 = vpop.f32.mrf.mxu0
        %v531 = vadd.f32 0.0, %v530
        %v532 = vpop.f32.mrf.mxu0
        %533 = vmatprep.mubr.f32.mxu0 0.0
        %534 = vmatmul.mubr.f32.gmra.mxu0 %v338
        %v535 = vpop.f32.mrf.mxu0
        %v536 = vadd.f32 0.0, %v535
        %v537 = vpop.f32.mrf.mxu0
        %538 = vdwg.mxu0
        %v539 = vld [vmem:[#allocation12] sm:$0xff]
        %v540 = vld [vmem:[#allocation12 + $0x8] sm:$0xff]
        %v541 = vld [vmem:[#allocation12 + $0x10] sm:$0xff]
        %v542 = vld [vmem:[#allocation12 + $0x18] sm:$0xff]
        %v543 = vld [vmem:[#allocation12 + $0x20] sm:$0xff]
        %v544 = vld [vmem:[#allocation12 + $0x28] sm:$0xff]
        %v545 = vld [vmem:[#allocation12 + $0x30] sm:$0xff]
        %v546 = vld [vmem:[#allocation12 + $0x38] sm:$0xff]
        %v547 = vld [vmem:[#allocation12 + $0x40] sm:$0xff]
        %v548 = vld [vmem:[#allocation12 + $0x48] sm:$0xff]
        %v549 = vld [vmem:[#allocation12 + $0x50] sm:$0xff]
        %v550 = vld [vmem:[#allocation12 + $0x58] sm:$0xff]
        %v551 = vld [vmem:[#allocation12 + $0x60] sm:$0xff]
        %v552 = vld [vmem:[#allocation12 + $0x68] sm:$0xff]
        %v553 = vld [vmem:[#allocation12 + $0x70] sm:$0xff]
        %v554 = vld [vmem:[#allocation12 + $0x78] sm:$0xff]
        %v555 = vld [vmem:[%s3] sm:$0x1]
        %v557 = vlaneseq
        %v558 = vshrl.u32 %v557, 7
        %v559 = vsub.s32 0, %v558
        %v560 = vrot.slane %v555, %v559
        %562 = vmatprep.subr.mxu0 0.0
        %563 = vmatpush1.msra.mxu0 %v554
        %564 = vmatprep.subr.mxu0 0.0
        %565 = vmatpush1.msra.mxu0 %v553
        %566 = vmatprep.subr.mxu0 0.0
        %567 = vmatpush1.msra.mxu0 %v552
        %568 = vmatprep.subr.mxu0 0.0
        %569 = vmatpush1.msra.mxu0 %v551
        %570 = vmatprep.subr.mxu0 0.0
        %571 = vmatpush1.msra.mxu0 %v550
        %572 = vmatprep.subr.mxu0 0.0
        %573 = vmatpush1.msra.mxu0 %v549
        %574 = vmatprep.subr.mxu0 0.0
        %575 = vmatpush1.msra.mxu0 %v548
        %576 = vmatprep.subr.mxu0 0.0
        %577 = vmatpush1.msra.mxu0 %v547
        %578 = vmatprep.subr.mxu0 0.0
        %579 = vmatpush1.msra.mxu0 %v546
        %580 = vmatprep.subr.mxu0 0.0
        %581 = vmatpush1.msra.mxu0 %v545
        %582 = vmatprep.subr.mxu0 0.0
        %583 = vmatpush1.msra.mxu0 %v544
        %584 = vmatprep.subr.mxu0 0.0
        %585 = vmatpush1.msra.mxu0 %v543
        %586 = vmatprep.subr.mxu0 0.0
        %587 = vmatpush1.msra.mxu0 %v542
        %588 = vmatprep.subr.mxu0 0.0
        %589 = vmatpush1.msra.mxu0 %v541
        %590 = vmatprep.subr.mxu0 0.0
        %591 = vmatpush1.msra.mxu0 %v540
        %592 = vmatprep.subr.mxu0 0.0
        %593 = vmatpush1.msra.mxu0 %v539
        %594 = vmatprep.subr.mxu0 0.0
        %595 = vmatpush2.msra.mxu0 0.0
        %596 = vmatprep.subr.mxu0 0.0
        %597 = vmatpush2.msra.mxu0 0.0
        %598 = vmatprep.subr.mxu0 0.0
        %599 = vmatpush2.msra.mxu0 0.0
        %600 = vmatprep.subr.mxu0 0.0
        %601 = vmatpush2.msra.mxu0 0.0
        %602 = vmatprep.subr.mxu0 0.0
        %603 = vmatpush2.msra.mxu0 0.0
        %604 = vmatprep.subr.mxu0 0.0
        %605 = vmatpush2.msra.mxu0 0.0
        %606 = vmatprep.subr.mxu0 0.0
        %607 = vmatpush2.msra.mxu0 0.0
        %608 = vmatprep.subr.mxu0 0.0
        %609 = vmatpush2.msra.mxu0 0.0
        %610 = vmatprep.subr.mxu0 0.0
        %611 = vmatpush2.msra.mxu0 0.0
        %612 = vmatprep.subr.mxu0 0.0
        %613 = vmatpush2.msra.mxu0 0.0
        %614 = vmatprep.subr.mxu0 0.0
        %615 = vmatpush2.msra.mxu0 0.0
        %616 = vmatprep.subr.mxu0 0.0
        %617 = vmatpush2.msra.mxu0 0.0
        %618 = vmatprep.subr.mxu0 0.0
        %619 = vmatpush2.msra.mxu0 0.0
        %620 = vmatprep.subr.mxu0 0.0
        %621 = vmatpush2.msra.mxu0 0.0
        %622 = vmatprep.subr.mxu0 0.0
        %623 = vmatpush2.msra.mxu0 0.0
        %624 = vmatprep.subr.mxu0 0.0
        %625 = vmatpush2.msra.mxu0 0.0
        %626 = vmatprep.mubr.f32.mxu0 0.0
        %627 = vmatmul.mubr.f32.gmra.mxu0 %v454
        %v628 = vpop.f32.mrf.mxu0
        %v629 = vadd.f32 %v560, %v628
        %v630 = vpop.f32.mrf.mxu0
        %631 = vmatprep.mubr.f32.mxu0 0.0
        %632 = vmatmul.mubr.f32.gmra.mxu0 %v460
        %v633 = vpop.f32.mrf.mxu0
        %v634 = vadd.f32 %v560, %v633
        %v635 = vpop.f32.mrf.mxu0
        %636 = vdwg.mxu0
        %v637 = vmax.f32 %v629, 0.0
        %v638 = vmax.f32 %v634, 0.0
        %vm639 = vcmp.ne.f32.partialorder %v629, %v629
        %vm640 = vcmp.ne.f32.partialorder %v634, %v634
        %v641 = vadd.f32 %v629, 0.0
        %v642 = vadd.f32 %v634, 0.0
        %v643 = vand.u32 2147483647, %v629
        %v644 = vand.u32 2147483647, %v634
        %v645 = vsub.f32 0.0, %v643
        %v646 = vsub.f32 0.0, %v644
        %v647 = vmul.f32 %v645, 1.442695
        %v648 = vpow.pop %v647
        %v649 = vmul.f32 %v646, 1.442695
        %v650 = vpow.pop %v649
        %v651 = vadd.f32 %v648, 1.0
        %v652 = vlog2.pop %v651
        %v653 = vmul.f32 %v652, 0.6931472
        %v654 = vmul.f32 -0.5, %v648
        %v655 = vadd.f32 %v654, 1.0
        %v656 = vmul.f32 %v655, %v648
        %v657 = vand.u32 2147483647, %v648
        %vm658 = vcmp.lt.f32.partialorder %v657, 0.0004427343
        %v659 = vsel %vm658, %v656, %v653
        %v660 = vadd.f32 %v650, 1.0
        %v661 = vlog2.pop %v660
        %v662 = vmul.f32 %v661, 0.6931472
        %v663 = vmul.f32 -0.5, %v650
        %v664 = vadd.f32 %v663, 1.0
        %v665 = vmul.f32 %v664, %v650
        %v666 = vand.u32 2147483647, %v650
        %vm667 = vcmp.lt.f32.partialorder %v666, 0.0004427343
        %v668 = vsel %vm667, %v665, %v662
        %v669 = vadd.f32 %v637, %v659
        %v670 = vadd.f32 %v638, %v668
        %v671 = vsel %vm639, %v641, %v669
        %v672 = vsel %vm640, %v642, %v670
        %673 = vst [vmem:[#allocation3] sm:$0xff] %v671
        %674 = vst [vmem:[#allocation3 + $0x8] sm:$0xff] %v672
        %v675 = vmul.f32 %v671, %v337
        %v676 = vmul.f32 %v672, %v338
        %677 = vst [vmem:[#allocation4] sm:$0xff] %v675
        %678 = vst [vmem:[#allocation4 + $0x8] sm:$0xff] %v676
        %679 = vst [vmem:[#allocation5] sm:$0xff] %v456
        %680 = vst [vmem:[#allocation5 + $0x8] sm:$0xff] %v462
        %681 = vst [vmem:[#allocation6] sm:$0xff] %v531
        %682 = vst [vmem:[#allocation6 + $0x8] sm:$0xff] %v536
        %v683 = vld [vmem:[#allocation13] sm:$0xff]
        %v684 = vld [vmem:[%s5] sm:$0x1]
        %v685 = vlaneseq
        %v686 = vshrl.u32 %v685, 7
        %v687 = vlaneseq
        %v688 = vand.u32 %v687, 127
        %vm689 = vcmp.eq.s32.totalorder %v686, %v688
        %v690 = vsel %vm689, 1, 0
        %v691 = vcvt.s32.f32 %v690
        %v692 = vld [vmem:[#allocation2] sm:$0xff]
        loop: start=0, step=1, limit=2
        $region65: #{tpu_custom_call.1} parent=43 // loop_pre_header
          _
        $region66: #{tpu_custom_call.1} parent=43 // loop_header
          %s694 = sphi 0, %s698
          %p695 = scmp.ge.s32.totalorder %s694, 2
          %v699 = vphi %v692, %v983
        $region67: #{tpu_custom_call.1} parent=43 // loop_header_branch
          %697 = sbr.rel (%p695) target = $region71
        $region68: #{tpu_custom_call.1} parent=43 // loop_body
          %s700 = smul.u32 %s694, 8
          %s701 = scalar_lea.vmem [#allocation3], %s700
          %v702 = vld [vmem:[%s701] sm:$0xff]
          %s703 = scalar_lea.vmem [#allocation4], %s700
          %v704 = vld [vmem:[%s703] sm:$0xff]
          %s705 = scalar_lea.vmem %s289, %s700 [#allocation7]
          %v706 = vld [vmem:[%s705] sm:$0xff]
          %s707 = scalar_lea.vmem [#allocation5], %s700
          %v708 = vld [vmem:[%s707] sm:$0xff]
          %s709 = scalar_lea.vmem [#allocation6], %s700
          %v710 = vld [vmem:[%s709] sm:$0xff]
          %v711 = vlaneseq
          %v712 = vshrl.u32 %v711, 7
          %v713 = vsub.s32 0, %v712
          %v714 = vrot.slane %v708, %v713
          %v715 = vmul.f32 %v714, %v691
          %716 = vadd.xlane.f32.xlu0 %v715
          %v717 = vpop.xlane.xlu0 %716
          %v718 = vlaneseq
          %v719 = vshrl.u32 %v718, 7
          %v720 = vsub.s32 0, %v719
          %v721 = vrot.slane %v710, %v720
          %v722 = vmul.f32 %v721, %v691
          %723 = vadd.xlane.f32.xlu0 %v722
          %v724 = vpop.xlane.xlu0 %723
          %v725 = vlaneseq
          %v726 = vshrl.u32 %v725, 7
          %v727 = vsub.s32 0, %v726
          %v728 = vrot.slane %v702, %v727
          %v729 = vmul.f32 %v728, %v683
          %v730 = vmul.f32 %v729, 1.442695
          %v731 = vpow.pop %v730
          %v732 = vlaneseq
          %v733 = vshrl.u32 %v732, 7
          %v734 = vsub.s32 0, %v733
          %v735 = vrot.slane %v704, %v734
          %v736 = vmul.f32 %v717, %v735
          %v737 = vmul.f32 %v731, %v699
          %v738 = vadd.f32 %v737, %v736
          %v739 = vmul.f32 %v724, %v738
          %v740 = vrot.slane %v739, 4
          %v741 = vadd.f32 %v739, %v740
          %v742 = vrot.slane %v741, 2
          %v743 = vadd.f32 %v741, %v742
          %v744 = vrot.slane %v743, 1
          %v745 = vadd.f32 %v743, %v744
          %v746 = vlaneseq
          %v747 = vshrl.u32 %v746, 7
          %v748 = vsub.s32 1, %v747
          %v749 = vrot.slane %v708, %v748
          %v750 = vmul.f32 %v749, %v691
          %751 = vadd.xlane.f32.xlu0 %v750
          %v752 = vpop.xlane.xlu0 %751
          %v753 = vlaneseq
          %v754 = vshrl.u32 %v753, 7
          %v755 = vsub.s32 1, %v754
          %v756 = vrot.slane %v710, %v755
          %v757 = vmul.f32 %v756, %v691
          %758 = vadd.xlane.f32.xlu0 %v757
          %v759 = vpop.xlane.xlu0 %758
          %v760 = vlaneseq
          %v761 = vshrl.u32 %v760, 7
          %v762 = vsub.s32 1, %v761
          %v763 = vrot.slane %v702, %v762
          %v764 = vmul.f32 %v763, %v683
          %v765 = vmul.f32 %v764, 1.442695
          %v766 = vpow.pop %v765
          %v767 = vlaneseq
          %v768 = vshrl.u32 %v767, 7
          %v769 = vsub.s32 1, %v768
          %v770 = vrot.slane %v704, %v769
          %v771 = vmul.f32 %v752, %v770
          %v772 = vmul.f32 %v766, %v738
          %v773 = vadd.f32 %v772, %v771
          %v774 = vmul.f32 %v759, %v773
          %v775 = vrot.slane %v774, 4
          %v776 = vadd.f32 %v774, %v775
          %v777 = vrot.slane %v776, 2
          %v778 = vadd.f32 %v776, %v777
          %v779 = vrot.slane %v778, 1
          %v780 = vadd.f32 %v778, %v779
          %v781 = vlaneseq
          %v782 = vshrl.u32 %v781, 7
          %v783 = vsub.s32 2, %v782
          %v784 = vrot.slane %v708, %v783
          %v785 = vmul.f32 %v784, %v691
          %786 = vadd.xlane.f32.xlu0 %v785
          %v787 = vpop.xlane.xlu0 %786
          %v788 = vlaneseq
          %v789 = vshrl.u32 %v788, 7
          %v790 = vsub.s32 2, %v789
          %v791 = vrot.slane %v710, %v790
          %v792 = vmul.f32 %v791, %v691
          %793 = vadd.xlane.f32.xlu0 %v792
          %v794 = vpop.xlane.xlu0 %793
          %v795 = vlaneseq
          %v796 = vshrl.u32 %v795, 7
          %v797 = vsub.s32 2, %v796
          %v798 = vrot.slane %v702, %v797
          %v799 = vmul.f32 %v798, %v683
          %v800 = vmul.f32 %v799, 1.442695
          %v801 = vpow.pop %v800
          %v802 = vlaneseq
          %v803 = vshrl.u32 %v802, 7
          %v804 = vsub.s32 2, %v803
          %v805 = vrot.slane %v704, %v804
          %v806 = vmul.f32 %v787, %v805
          %v807 = vmul.f32 %v801, %v773
          %v808 = vadd.f32 %v807, %v806
          %v809 = vmul.f32 %v794, %v808
          %v810 = vrot.slane %v809, 4
          %v811 = vadd.f32 %v809, %v810
          %v812 = vrot.slane %v811, 2
          %v813 = vadd.f32 %v811, %v812
          %v814 = vrot.slane %v813, 1
          %v815 = vadd.f32 %v813, %v814
          %v816 = vlaneseq
          %v817 = vshrl.u32 %v816, 7
          %v818 = vsub.s32 3, %v817
          %v819 = vrot.slane %v708, %v818
          %v820 = vmul.f32 %v819, %v691
          %821 = vadd.xlane.f32.xlu0 %v820
          %v822 = vpop.xlane.xlu0 %821
          %v823 = vlaneseq
          %v824 = vshrl.u32 %v823, 7
          %v825 = vsub.s32 3, %v824
          %v826 = vrot.slane %v710, %v825
          %v827 = vmul.f32 %v826, %v691
          %828 = vadd.xlane.f32.xlu0 %v827
          %v829 = vpop.xlane.xlu0 %828
          %v830 = vlaneseq
          %v831 = vshrl.u32 %v830, 7
          %v832 = vsub.s32 3, %v831
          %v833 = vrot.slane %v702, %v832
          %v834 = vmul.f32 %v833, %v683
          %v835 = vmul.f32 %v834, 1.442695
          %v836 = vpow.pop %v835
          %v837 = vlaneseq
          %v838 = vshrl.u32 %v837, 7
          %v839 = vsub.s32 3, %v838
          %v840 = vrot.slane %v704, %v839
          %v841 = vmul.f32 %v822, %v840
          %v842 = vmul.f32 %v836, %v808
          %v843 = vadd.f32 %v842, %v841
          %v844 = vmul.f32 %v829, %v843
          %v845 = vrot.slane %v844, 4
          %v846 = vadd.f32 %v844, %v845
          %v847 = vrot.slane %v846, 2
          %v848 = vadd.f32 %v846, %v847
          %v849 = vrot.slane %v848, 1
          %v850 = vadd.f32 %v848, %v849
          %v851 = vlaneseq
          %v852 = vshrl.u32 %v851, 7
          %v853 = vsub.s32 4, %v852
          %v854 = vrot.slane %v708, %v853
          %v855 = vmul.f32 %v854, %v691
          %856 = vadd.xlane.f32.xlu0 %v855
          %v857 = vpop.xlane.xlu0 %856
          %v858 = vlaneseq
          %v859 = vshrl.u32 %v858, 7
          %v860 = vsub.s32 4, %v859
          %v861 = vrot.slane %v710, %v860
          %v862 = vmul.f32 %v861, %v691
          %863 = vadd.xlane.f32.xlu0 %v862
          %v864 = vpop.xlane.xlu0 %863
          %v865 = vlaneseq
          %v866 = vshrl.u32 %v865, 7
          %v867 = vsub.s32 4, %v866
          %v868 = vrot.slane %v702, %v867
          %v869 = vmul.f32 %v868, %v683
          %v870 = vmul.f32 %v869, 1.442695
          %v871 = vpow.pop %v870
          %v872 = vlaneseq
          %v873 = vshrl.u32 %v872, 7
          %v874 = vsub.s32 4, %v873
          %v875 = vrot.slane %v704, %v874
          %v876 = vmul.f32 %v857, %v875
          %v877 = vmul.f32 %v871, %v843
          %v878 = vadd.f32 %v877, %v876
          %v879 = vmul.f32 %v864, %v878
          %v880 = vrot.slane %v879, 4
          %v881 = vadd.f32 %v879, %v880
          %v882 = vrot.slane %v881, 2
          %v883 = vadd.f32 %v881, %v882
          %v884 = vrot.slane %v883, 1
          %v885 = vadd.f32 %v883, %v884
          %v886 = vlaneseq
          %v887 = vshrl.u32 %v886, 7
          %v888 = vsub.s32 5, %v887
          %v889 = vrot.slane %v708, %v888
          %v890 = vmul.f32 %v889, %v691
          %891 = vadd.xlane.f32.xlu0 %v890
          %v892 = vpop.xlane.xlu0 %891
          %v893 = vlaneseq
          %v894 = vshrl.u32 %v893, 7
          %v895 = vsub.s32 5, %v894
          %v896 = vrot.slane %v710, %v895
          %v897 = vmul.f32 %v896, %v691
          %898 = vadd.xlane.f32.xlu0 %v897
          %v899 = vpop.xlane.xlu0 %898
          %v900 = vlaneseq
          %v901 = vshrl.u32 %v900, 7
          %v902 = vsub.s32 5, %v901
          %v903 = vrot.slane %v702, %v902
          %v904 = vmul.f32 %v903, %v683
          %v905 = vmul.f32 %v904, 1.442695
          %v906 = vpow.pop %v905
          %v907 = vlaneseq
          %v908 = vshrl.u32 %v907, 7
          %v909 = vsub.s32 5, %v908
          %v910 = vrot.slane %v704, %v909
          %v911 = vmul.f32 %v892, %v910
          %v912 = vmul.f32 %v906, %v878
          %v913 = vadd.f32 %v912, %v911
          %v914 = vmul.f32 %v899, %v913
          %v915 = vrot.slane %v914, 4
          %v916 = vadd.f32 %v914, %v915
          %v917 = vrot.slane %v916, 2
          %v918 = vadd.f32 %v916, %v917
          %v919 = vrot.slane %v918, 1
          %v920 = vadd.f32 %v918, %v919
          %v921 = vlaneseq
          %v922 = vshrl.u32 %v921, 7
          %v923 = vsub.s32 6, %v922
          %v924 = vrot.slane %v708, %v923
          %v925 = vmul.f32 %v924, %v691
          %926 = vadd.xlane.f32.xlu0 %v925
          %v927 = vpop.xlane.xlu0 %926
          %v928 = vlaneseq
          %v929 = vshrl.u32 %v928, 7
          %v930 = vsub.s32 6, %v929
          %v931 = vrot.slane %v710, %v930
          %v932 = vmul.f32 %v931, %v691
          %933 = vadd.xlane.f32.xlu0 %v932
          %v934 = vpop.xlane.xlu0 %933
          %v935 = vlaneseq
          %v936 = vshrl.u32 %v935, 7
          %v937 = vsub.s32 6, %v936
          %v938 = vrot.slane %v702, %v937
          %v939 = vmul.f32 %v938, %v683
          %v940 = vmul.f32 %v939, 1.442695
          %v941 = vpow.pop %v940
          %v942 = vlaneseq
          %v943 = vshrl.u32 %v942, 7
          %v944 = vsub.s32 6, %v943
          %v945 = vrot.slane %v704, %v944
          %v946 = vmul.f32 %v927, %v945
          %v947 = vmul.f32 %v941, %v913
          %v948 = vadd.f32 %v947, %v946
          %v949 = vmul.f32 %v934, %v948
          %v950 = vrot.slane %v949, 4
          %v951 = vadd.f32 %v949, %v950
          %v952 = vrot.slane %v951, 2
          %v953 = vadd.f32 %v951, %v952
          %v954 = vrot.slane %v953, 1
          %v955 = vadd.f32 %v953, %v954
          %v956 = vlaneseq
          %v957 = vshrl.u32 %v956, 7
          %v958 = vsub.s32 7, %v957
          %v959 = vrot.slane %v708, %v958
          %v960 = vmul.f32 %v959, %v691
          %961 = vadd.xlane.f32.xlu0 %v960
          %v962 = vpop.xlane.xlu0 %961
          %v963 = vlaneseq
          %v964 = vshrl.u32 %v963, 7
          %v965 = vsub.s32 7, %v964
          %v966 = vrot.slane %v710, %v965
          %v967 = vmul.f32 %v966, %v691
          %968 = vadd.xlane.f32.xlu0 %v967
          %v969 = vpop.xlane.xlu0 %968
          %v970 = vlaneseq
          %v971 = vshrl.u32 %v970, 7
          %v972 = vsub.s32 7, %v971
          %v973 = vrot.slane %v702, %v972
          %v974 = vmul.f32 %v973, %v683
          %v975 = vmul.f32 %v974, 1.442695
          %v976 = vpow.pop %v975
          %v977 = vlaneseq
          %v978 = vshrl.u32 %v977, 7
          %v979 = vsub.s32 7, %v978
          %v980 = vrot.slane %v704, %v979
          %v981 = vmul.f32 %v962, %v980
          %v982 = vmul.f32 %v976, %v948
          %v983 = vadd.f32 %v982, %v981
          %v984 = vmul.f32 %v969, %v983
          %v985 = vrot.slane %v984, 4
          %v986 = vadd.f32 %v984, %v985
          %v987 = vrot.slane %v986, 2
          %v988 = vadd.f32 %v986, %v987
          %v989 = vrot.slane %v988, 1
          %v990 = vadd.f32 %v988, %v989
          %vm991 = vcmask 1040384
          %v992 = vsel %vm991, %v745, %v780
          %vm993 = vcmask 1041408
          %v994 = vsel %vm993, %v992, %v815
          %vm995 = vcmask 1042432
          %v996 = vsel %vm995, %v994, %v850
          %vm997 = vcmask 1043456
          %v998 = vsel %vm997, %v996, %v885
          %vm999 = vcmask 1044480
          %v1000 = vsel %vm999, %v998, %v920
          %vm1001 = vcmask 1045504
          %v1002 = vsel %vm1001, %v1000, %v955
          %vm1003 = vcmask 1046528
          %v1004 = vsel %vm1003, %v1002, %v990
          %v1006 = vlaneseq
          %v1007 = vshrl.u32 %v1006, 7
          %v1008 = vsub.s32 0, %v1007
          %v1009 = vrot.slane %v684, %v1008
          %v1011 = vmul.f32 %v1009, %v706
          %v1012 = vadd.f32 %v1004, %v1011
          %s1013 = scalar_lea.vmem %s329, %s700 [#allocation15]
          %1014 = vst [vmem:[%s1013] sm:$0xff] %v1012
        $region69: #{tpu_custom_call.1} parent=43 // loop_footer
          %s698 = sadd.s32 1, %s694
        $region70: #{tpu_custom_call.1} parent=43 // loop_footer_branch
          %693 = sbr.rel target = $region66
        $region71: #{tpu_custom_call.1} parent=43 // loop_exit
          _
        %1015 = vst [vmem:[#allocation2] sm:$0xff] %v699
        %s1016 = sand.u32 %s180, 1
        %s1017 = scalar_lea.sflag [#allocation9], %s1016
        %s1018 = sand.u32 %s180, 1
        %s1019 = smul.addr %s1018, 16
        %s1020 = scalar_lea.vmem [#allocation15], %s1019
        // Predicated region
        $region72: #{tpu_custom_call.1} parent=43 // pred_check
          %p1021 = pneg %p190
        $region73: #{tpu_custom_call.1} parent=43 // pred_check_branch
          %1023 = sbr.rel (%p1021) target = $region75
        $region74: #{tpu_custom_call.1} parent=43 // pred_region
          %s1024 = smul.u32 2, %s30
          %s1026 = ssub.s32 256, 256
          %1027 = vsyncadd %s1017, %s1026
          %s1028 = smul.addr %s29, 4
          %s1029 = sadd.s32 %s1024, %s1028
          %s1030 = smul.addr %s1029, 128
          %s1031 = scalar_lea.hbm %s6, %s1030
          %s1032 = sshll.u32 %s1020, 4
          %s1033 = int_to_ptr.vmem [resolvable:$true] %s1032
          %1038 = dma.vmem_to_hbm [thread:$0]  %s1033, 256, %s1031, %s1017, 128, 128, 8
        $region75: #{tpu_custom_call.1} parent=43 // pred_fallthru
          _
      $region44: #{tpu_custom_call.1} parent=5 // pred_fallthru
        _
      %p1039 = scmp.le.s32.totalorder 2, %s20
      // Predicated region
      $region76: #{tpu_custom_call.1} parent=5 // pred_check
        %p1040 = pneg %p1039
      $region77: #{tpu_custom_call.1} parent=5 // pred_check_branch
        %1042 = sbr.rel (%p1040) target = $region79
      $region78: #{tpu_custom_call.1} parent=5 // pred_region
        %s1043 = ssub.s32 %s20, 2
        // Predicated region
        $region80: #{tpu_custom_call.1} parent=78 // pred_check
          %p1044 = pneg %p196
        $region81: #{tpu_custom_call.1} parent=78 // pred_check_branch
          %1046 = sbr.rel (%p1044) target = $region83
        $region82: #{tpu_custom_call.1} parent=78 // pred_region
          %s1047 = sand.u32 %s181, 1
          %s1048 = scalar_lea.sflag [#allocation9], %s1047
          %s1049 = sand.u32 %s181, 1
          %s1050 = smul.addr %s1049, 16
          %s1051 = scalar_lea.vmem [#allocation15], %s1050
          %1052 = dma.done %s1048, 256
        $region83: #{tpu_custom_call.1} parent=78 // pred_fallthru
          _
      $region79: #{tpu_custom_call.1} parent=5 // pred_fallthru
        _
    $region6: #{tpu_custom_call.1} parent=1 // loop_footer
      %s24 = sadd.s32 1, %s20
    $region7: #{tpu_custom_call.1} parent=1 // loop_footer_branch
      %19 = sbr.rel target = $region3
    $region8: #{tpu_custom_call.1} parent=1 // loop_exit
      _
    %1053 = vsyncpa [#allocation8], 1
    %s1054 = scalar_lea.sflag [#allocation8], 1
    %1055 = vsyncpa %s1054, 1
    %1056 = vsyncpa [#allocation11], 1
    %1057 = vsyncpa [#allocation14], 1
    %1058 = vsyncpa [#allocation9], 1
    %s1059 = scalar_lea.sflag [#allocation9], 1
    %1060 = vsyncpa %s1059, 1

</llo_original>
